<compile_context>
chip_gen: v5e
topology: v5e:2x2
jax: 0.10.0
libtpu: 0.0.40
codegen_flags: <defaults>
</compile_context>

<pallas_src>
import functools

import jax
import jax.numpy as jnp
from jax.experimental import pallas as pl
from jax.experimental.pallas import tpu as pltpu


def _round_up(x, m):
    return ((x + m - 1) // m) * m


def _make_kernel(T, Tc, Bc, H, O_pad, mxu_dtype, needs_time_mask, unroll):
    four_h = 4 * H

    def kernel(gx_ref, whh_ref, wfc_ref, bfc_ref, out_ref, h_sc, c_sc):
        tb = pl.program_id(1)

        @pl.when(tb == 0)
        def _():
            h_sc[...] = jnp.zeros_like(h_sc)
            c_sc[...] = jnp.zeros_like(c_sc)

        # Lane mask selecting the g-gate (tanh) lanes of the (Bc, 4H) tile.
        lane = jax.lax.broadcasted_iota(jnp.int32, (Bc, four_h), 1)
        is_g = jnp.logical_and(lane >= 2 * H, lane < 3 * H)

        def step(t, carry):
            h, c = carry
            gates = gx_ref[t] + jnp.dot(
                h.astype(mxu_dtype), whh_ref[...],
                preferred_element_type=jnp.float32)
            # Single full-width sigmoid (one EUP push) using
            # tanh(x) = 2*sigmoid(2x) - 1 for the g-gate lanes.
            pre = jnp.where(is_g, gates + gates, gates)
            s = jax.nn.sigmoid(pre)
            act = jnp.where(is_g, s + s - 1.0, s)
            i_g = act[:, 0 * H:1 * H]
            f_g = act[:, 1 * H:2 * H]
            g_g = act[:, 2 * H:3 * H]
            o_g = act[:, 3 * H:4 * H]
            c_new = f_g * c + i_g * g_g
            h_new = o_g * jnp.tanh(c_new)
            if needs_time_mask:
                # Padded trailing time steps (time axis rounded up to a
                # multiple of Tc) must not update the state.
                valid = (tb * Tc + t) < T
                h_new = jnp.where(valid, h_new, h)
                c_new = jnp.where(valid, c_new, c)
            return (h_new, c_new)

        h, c = jax.lax.fori_loop(0, Tc, step, (h_sc[...], c_sc[...]),
                                 unroll=unroll)
        h_sc[...] = h
        c_sc[...] = c

        @pl.when(tb == pl.num_programs(1) - 1)
        def _():
            out_ref[...] = (
                jnp.dot(h.astype(mxu_dtype), wfc_ref[...],
                        preferred_element_type=jnp.float32) + bfc_ref[...])

    return kernel


def rnn_classifier_forward(x, params, *, mxu_dtype=jnp.bfloat16):
    """x: (B, T) int32 token indices. Returns logits (B, output_dim) float32."""
    if x.ndim == 1:
        x = x[None, :]
    x = x.astype(jnp.int32)
    B, T = x.shape

    emb_table = params["embedding"].astype(jnp.float32)            # (V, E)
    w_ih = params["w_ih"].astype(jnp.float32)                      # (4H, E)
    w_hh = params["w_hh"].astype(jnp.float32)                      # (4H, H)
    bias = (params["b_ih"] + params["b_hh"]).astype(jnp.float32)   # (4H,)
    w_fc = params["w_fc"].astype(jnp.float32)                      # (O, H)
    b_fc = params["b_fc"].astype(jnp.float32)                      # (O,)

    H = w_hh.shape[1]
    O = w_fc.shape[0]
    four_h = 4 * H

    # ---- batch tiling: pad to a sublane multiple; split into 2 blocks when
    # big enough so v7x's second TensorCore gets work ("parallel" grid axis).
    B_pad = max(8, _round_up(B, 8))
    if B_pad >= 16:
        B_pad = _round_up(B_pad, 16)
        Bc = B_pad // 2
    else:
        Bc = B_pad
    n_b = B_pad // Bc

    O_pad = max(128, _round_up(O, 128))   # lane-dense output store

    # ---- time tiling: keep the whole gx stream resident when small,
    # otherwise stream ~8 MiB chunks (double-buffered by BlockSpec) so the
    # working set fits scoped VMEM (16/32 MiB default; 64 MiB physical on v7x).
    gx_step_bytes = Bc * four_h * 4
    target_chunk_bytes = 8 << 20
    if T * gx_step_bytes <= target_chunk_bytes:
        Tc = T
    else:
        Tc = max(1, target_chunk_bytes // gx_step_bytes)
    n_t = -(-T // Tc)
    T_pad = n_t * Tc

    # ---- fused embedding + input projection (V << T*B): one-time (V,E)@(E,4H)
    # in XLA, then a gather.  gx is lane-dense (last dim 4H) by construction.
    fused = emb_table @ w_ih.T + bias[None, :]                      # (V, 4H)

    if B_pad != B:
        x_p = jnp.concatenate([x, jnp.zeros((B_pad - B, T), jnp.int32)], 0)
    else:
        x_p = x
    gx = jnp.take(fused, x_p.T, axis=0)                             # (T, B_pad, 4H)
    if T_pad != T:
        gx = jnp.concatenate(
            [gx, jnp.zeros((T_pad - T, B_pad, four_h), jnp.float32)], 0)

    whh_c = w_hh.T.astype(mxu_dtype)                                # (H, 4H)
    wfc_c = jnp.zeros((H, O_pad), jnp.float32).at[:, :O].set(
        w_fc.T).astype(mxu_dtype)                                   # (H, O_pad)
    bfc_row = jnp.zeros((1, O_pad), jnp.float32).at[:, :O].set(b_fc)

    # ---- unroll heuristic: full unroll while one step's gates+act temporaries
    # stay small; bounded unroll otherwise to avoid vreg spill on the serial
    # critical path.  TODO(synk): sweep 2..8 at production shapes.
    step_vregs = -(-(2 * Bc * four_h) // 1024)
    unroll = True if step_vregs <= 16 else 4

    kernel = _make_kernel(T, Tc, Bc, H, O_pad, mxu_dtype, T_pad != T, unroll)

    itemsize_w = jnp.dtype(mxu_dtype).itemsize
    resident_bytes = (
        2 * Tc * Bc * four_h * 4          # gx block, double-buffered
        + 2 * H * four_h * itemsize_w     # whh
        + 2 * H * O_pad * itemsize_w      # wfc
        + 2 * O_pad * 4                   # bfc
        + 2 * Bc * O_pad * 4              # out block
        + 2 * Bc * H * 4)                 # h, c scratch
    vmem_limit = int(min(64 << 20, max(4 << 20, 2 * resident_bytes)))

    out = pl.pallas_call(
        kernel,
        out_shape=jax.ShapeDtypeStruct((B_pad, O_pad), jnp.float32),
        grid=(n_b, n_t),
        in_specs=[
            pl.BlockSpec((Tc, Bc, four_h), lambda b, tb: (tb, b, 0)),
            pl.BlockSpec((H, four_h), lambda b, tb: (0, 0)),
            pl.BlockSpec((H, O_pad), lambda b, tb: (0, 0)),
            pl.BlockSpec((1, O_pad), lambda b, tb: (0, 0)),
        ],
        out_specs=pl.BlockSpec((Bc, O_pad), lambda b, tb: (b, 0)),
        scratch_shapes=[pltpu.VMEM((Bc, H), jnp.float32),
                        pltpu.VMEM((Bc, H), jnp.float32)],
        compiler_params=pltpu.CompilerParams(
            dimension_semantics=("parallel", "arbitrary"),
            vmem_limit_bytes=vmem_limit),
    )(gx, whh_c, wfc_c, bfc_row)

    return out[:B, :O]


def _reference_forward(x, params):
    """Pure-JAX f32 reference of the same forward (for sanity check)."""
    if x.ndim == 1:
        x = x[None, :]
    emb = jnp.take(params["embedding"], x, axis=0).astype(jnp.float32)  # (B,T,E)
    B, T, E = emb.shape
    H = params["w_hh"].shape[1]
    wih_T = params["w_ih"].T
    whh_T = params["w_hh"].T
    bias = params["b_ih"] + params["b_hh"]
    h = jnp.zeros((B, H), jnp.float32)
    c = jnp.zeros((B, H), jnp.float32)
    for t in range(T):
        g = emb[:, t, :] @ wih_T + h @ whh_T + bias
        i_g = jax.nn.sigmoid(g[:, 0 * H:1 * H])
        f_g = jax.nn.sigmoid(g[:, 1 * H:2 * H])
        g_g = jnp.tanh(g[:, 2 * H:3 * H])
        o_g = jax.nn.sigmoid(g[:, 3 * H:4 * H])
        c = f_g * c + i_g * g_g
        h = o_g * jnp.tanh(c)
    return h @ params["w_fc"].T + params["b_fc"]


def make_params(key, vocab_size, embed_dim, hidden_dim, output_dim):
    ks = jax.random.split(key, 7)
    s = 0.1
    return {
        "embedding": s * jax.random.normal(ks[0], (vocab_size, embed_dim), jnp.float32),
        "w_ih": s * jax.random.normal(ks[1], (4 * hidden_dim, embed_dim), jnp.float32),
        "w_hh": s * jax.random.normal(ks[2], (4 * hidden_dim, hidden_dim), jnp.float32),
        "b_ih": s * jax.random.normal(ks[3], (4 * hidden_dim,), jnp.float32),
        "b_hh": s * jax.random.normal(ks[4], (4 * hidden_dim,), jnp.float32),
        "w_fc": s * jax.random.normal(ks[5], (output_dim, hidden_dim), jnp.float32),
        "b_fc": s * jax.random.normal(ks[6], (output_dim,), jnp.float32),
    }


if __name__ == "__main__":
    # Small shapes consistent with the module: 27-char vocab, max_length=20 seq.
    VOCAB, EMBED, HIDDEN, OUT = 27, 16, 32, 2
    B, T = 2, 20

    key = jax.random.PRNGKey(0)
    k_params, k_x = jax.random.split(key)
    params = make_params(k_params, VOCAB, EMBED, HIDDEN, OUT)
    x = jax.random.randint(k_x, (B, T), 0, VOCAB, dtype=jnp.int32)

    ref = _reference_forward(x, params)

    # 1) Semantic check: f32 MXU operands must match the f32 reference tightly.
    fwd_f32 = jax.jit(functools.partial(rnn_classifier_forward,
                                        mxu_dtype=jnp.float32))
    logits_f32 = jax.block_until_ready(fwd_f32(x, params))
    assert logits_f32.shape == (B, OUT)
    assert jnp.allclose(logits_f32, ref, atol=1e-4, rtol=1e-4)

    # 2) Default (perf) config: bf16 MXU operands with f32 accumulation --
    #    looser tolerance accounts for bf16 rounding of the recurrent matmuls.
    fwd = jax.jit(rnn_classifier_forward)
    logits = jax.block_until_ready(fwd(x, params))
    assert logits.shape == (B, OUT)
    assert jnp.allclose(logits, ref, atol=2e-2, rtol=2e-2)

    print("KERNEL_OK")
</pallas_src>

<mosaic_0001>
module attributes {stable_mosaic.version = 11 : i64} {
  func.func @kernel(%arg0: i32, %arg1: i32, %arg2: memref<20x8x128xf32, #tpu.memory_space<vmem>>, %arg3: memref<32x128xf32, #tpu.memory_space<vmem>>, %arg4: memref<32x128xf32, #tpu.memory_space<vmem>>, %arg5: memref<1x128xf32, #tpu.memory_space<vmem>>, %arg6: memref<8x128xf32, #tpu.memory_space<vmem>>, %arg7: memref<8x32xf32, #tpu.memory_space<vmem>>, %arg8: memref<8x32xf32, #tpu.memory_space<vmem>>) attributes {dimension_semantics = [#tpu.dimension_semantics<parallel>, #tpu.dimension_semantics<arbitrary>], iteration_bounds = array<i64: 1, 1>, scalar_prefetch = 0 : i64, scratch_operands = 2 : i64, tpu.core_type = #tpu.core_type<tc>, window_params = [{transform_indices = @transform_0, window_bounds = array<i64: 20, 8, 128>}, {pipeline_mode = #tpu.pipeline_mode<synchronous>, transform_indices = @transform_1, window_bounds = array<i64: 32, 128>}, {pipeline_mode = #tpu.pipeline_mode<synchronous>, transform_indices = @transform_2, window_bounds = array<i64: 32, 128>}, {pipeline_mode = #tpu.pipeline_mode<synchronous>, transform_indices = @transform_3, window_bounds = array<i64: 1, 128>}, {transform_indices = @transform_4, window_bounds = array<i64: 8, 128>}]} {
    %c0_i32 = arith.constant 0 : i32
    %0 = arith.cmpi eq, %arg1, %c0_i32 : i32
    %1 = arith.extui %0 : i1 to i32
    %c0_i32_0 = arith.constant 0 : i32
    %2 = arith.cmpi ne, %1, %c0_i32_0 : i32
    scf.if %2 {
      %cst_150 = arith.constant 0.000000e+00 : f32
      %536 = vector.broadcast %cst_150 : f32 to vector<8x32xf32>
      %c0_151 = arith.constant 0 : index
      %c0_152 = arith.constant 0 : index
      %537 = vector.load %arg7[%c0_151, %c0_152] : memref<8x32xf32, #tpu.memory_space<vmem>>, vector<8x32xf32>
      tpu.vector_store %arg7[%c0_151, %c0_152], %536 {strides = array<i32>} : memref<8x32xf32, #tpu.memory_space<vmem>>, vector<8x32xf32>,
      %cst_153 = arith.constant 0.000000e+00 : f32
      %538 = vector.broadcast %cst_153 : f32 to vector<8x32xf32>
      %c0_154 = arith.constant 0 : index
      %c0_155 = arith.constant 0 : index
      %539 = vector.load %arg8[%c0_154, %c0_155] : memref<8x32xf32, #tpu.memory_space<vmem>>, vector<8x32xf32>
      tpu.vector_store %arg8[%c0_154, %c0_155], %538 {strides = array<i32>} : memref<8x32xf32, #tpu.memory_space<vmem>>, vector<8x32xf32>,
    } else {
    }
    %3 = tpu.iota {dimensions = array<i32: 1>} : vector<8x128xi32>
    %c64_i32 = arith.constant 64 : i32
    %4 = vector.broadcast %c64_i32 : i32 to vector<8x128xi32>
    %5 = arith.cmpi sge, %3, %4 : vector<8x128xi32>
    %c96_i32 = arith.constant 96 : i32
    %6 = vector.broadcast %c96_i32 : i32 to vector<8x128xi32>
    %7 = arith.cmpi slt, %3, %6 : vector<8x128xi32>
    %8 = arith.andi %5, %7 : vector<8x128xi1>
    %c0 = arith.constant 0 : index
    %c0_1 = arith.constant 0 : index
    %9 = vector.load %arg7[%c0, %c0_1] : memref<8x32xf32, #tpu.memory_space<vmem>>, vector<8x32xf32>
    %c0_2 = arith.constant 0 : index
    %c0_3 = arith.constant 0 : index
    %10 = vector.load %arg8[%c0_2, %c0_3] : memref<8x32xf32, #tpu.memory_space<vmem>>, vector<8x32xf32>
    %c0_i32_4 = arith.constant 0 : i32
    %11 = arith.index_cast %c0_i32_4 : i32 to index
    %c0_5 = arith.constant 0 : index
    %c0_6 = arith.constant 0 : index
    %12 = vector.load %arg2[%11, %c0_5, %c0_6] : memref<20x8x128xf32, #tpu.memory_space<vmem>>, vector<1x8x128xf32>
    %13 = vector.shape_cast %12 : vector<1x8x128xf32> to vector<8x128xf32>
    %c0_7 = arith.constant 0 : index
    %c0_8 = arith.constant 0 : index
    %14 = vector.load %arg3[%c0_7, %c0_8] : memref<32x128xf32, #tpu.memory_space<vmem>>, vector<32x128xf32>
    %cst = arith.constant dense<0.000000e+00> : vector<8x128xf32>
    %15 = tpu.matmul %9, %14, %cst {dimension_numbers = #tpu.dot_dimension_numbers<[1], [0], [0], [1], [0, 0, 1, 1], [], []>} : vector<8x32xf32>, vector<32x128xf32>, vector<8x128xf32> -> vector<8x128xf32>
    %16 = arith.addf %13, %15 : vector<8x128xf32>
    %17 = arith.addf %16, %16 : vector<8x128xf32>
    %18 = arith.select %8, %17, %16 : vector<8x128xi1>, vector<8x128xf32>
    %19 = arith.negf %18 : vector<8x128xf32>
    %20 = math.exp %19 : vector<8x128xf32>
    %cst_9 = arith.constant 1.000000e+00 : f32
    %21 = vector.broadcast %cst_9 : f32 to vector<8x128xf32>
    %22 = arith.addf %21, %20 : vector<8x128xf32>
    %23 = arith.divf %21, %22 : vector<8x128xf32>
    %24 = arith.addf %23, %23 : vector<8x128xf32>
    %cst_10 = arith.constant 1.000000e+00 : f32
    %25 = vector.broadcast %cst_10 : f32 to vector<8x128xf32>
    %26 = arith.subf %24, %25 : vector<8x128xf32>
    %27 = arith.select %8, %26, %23 : vector<8x128xi1>, vector<8x128xf32>
    %28 = vector.extract_strided_slice %27 {offsets = [0, 0], sizes = [8, 32], strides = [1, 1]} : vector<8x128xf32> to vector<8x32xf32>
    %29 = vector.extract_strided_slice %27 {offsets = [0, 32], sizes = [8, 32], strides = [1, 1]} : vector<8x128xf32> to vector<8x32xf32>
    %30 = vector.extract_strided_slice %27 {offsets = [0, 64], sizes = [8, 32], strides = [1, 1]} : vector<8x128xf32> to vector<8x32xf32>
    %31 = vector.extract_strided_slice %27 {offsets = [0, 96], sizes = [8, 32], strides = [1, 1]} : vector<8x128xf32> to vector<8x32xf32>
    %32 = arith.mulf %29, %10 : vector<8x32xf32>
    %33 = arith.mulf %28, %30 : vector<8x32xf32>
    %34 = arith.addf %32, %33 : vector<8x32xf32>
    %35 = math.tanh %34 : vector<8x32xf32>
    %36 = arith.mulf %31, %35 : vector<8x32xf32>
    %c1_i32 = arith.constant 1 : i32
    %37 = arith.index_cast %c1_i32 : i32 to index
    %c0_11 = arith.constant 0 : index
    %c0_12 = arith.constant 0 : index
    %38 = vector.load %arg2[%37, %c0_11, %c0_12] : memref<20x8x128xf32, #tpu.memory_space<vmem>>, vector<1x8x128xf32>
    %39 = vector.shape_cast %38 : vector<1x8x128xf32> to vector<8x128xf32>
    %c0_13 = arith.constant 0 : index
    %c0_14 = arith.constant 0 : index
    %40 = vector.load %arg3[%c0_13, %c0_14] : memref<32x128xf32, #tpu.memory_space<vmem>>, vector<32x128xf32>
    %cst_15 = arith.constant dense<0.000000e+00> : vector<8x128xf32>
    %41 = tpu.matmul %36, %40, %cst_15 {dimension_numbers = #tpu.dot_dimension_numbers<[1], [0], [0], [1], [0, 0, 1, 1], [], []>} : vector<8x32xf32>, vector<32x128xf32>, vector<8x128xf32> -> vector<8x128xf32>
    %42 = arith.addf %39, %41 : vector<8x128xf32>
    %43 = arith.addf %42, %42 : vector<8x128xf32>
    %44 = arith.select %8, %43, %42 : vector<8x128xi1>, vector<8x128xf32>
    %45 = arith.negf %44 : vector<8x128xf32>
    %46 = math.exp %45 : vector<8x128xf32>
    %cst_16 = arith.constant 1.000000e+00 : f32
    %47 = vector.broadcast %cst_16 : f32 to vector<8x128xf32>
    %48 = arith.addf %47, %46 : vector<8x128xf32>
    %49 = arith.divf %47, %48 : vector<8x128xf32>
    %50 = arith.addf %49, %49 : vector<8x128xf32>
    %cst_17 = arith.constant 1.000000e+00 : f32
    %51 = vector.broadcast %cst_17 : f32 to vector<8x128xf32>
    %52 = arith.subf %50, %51 : vector<8x128xf32>
    %53 = arith.select %8, %52, %49 : vector<8x128xi1>, vector<8x128xf32>
    %54 = vector.extract_strided_slice %53 {offsets = [0, 0], sizes = [8, 32], strides = [1, 1]} : vector<8x128xf32> to vector<8x32xf32>
    %55 = vector.extract_strided_slice %53 {offsets = [0, 32], sizes = [8, 32], strides = [1, 1]} : vector<8x128xf32> to vector<8x32xf32>
    %56 = vector.extract_strided_slice %53 {offsets = [0, 64], sizes = [8, 32], strides = [1, 1]} : vector<8x128xf32> to vector<8x32xf32>
    %57 = vector.extract_strided_slice %53 {offsets = [0, 96], sizes = [8, 32], strides = [1, 1]} : vector<8x128xf32> to vector<8x32xf32>
    %58 = arith.mulf %55, %34 : vector<8x32xf32>
    %59 = arith.mulf %54, %56 : vector<8x32xf32>
    %60 = arith.addf %58, %59 : vector<8x32xf32>
    %61 = math.tanh %60 : vector<8x32xf32>
    %62 = arith.mulf %57, %61 : vector<8x32xf32>
    %c2_i32 = arith.constant 2 : i32
    %63 = arith.index_cast %c2_i32 : i32 to index
    %c0_18 = arith.constant 0 : index
    %c0_19 = arith.constant 0 : index
    %64 = vector.load %arg2[%63, %c0_18, %c0_19] : memref<20x8x128xf32, #tpu.memory_space<vmem>>, vector<1x8x128xf32>
    %65 = vector.shape_cast %64 : vector<1x8x128xf32> to vector<8x128xf32>
    %c0_20 = arith.constant 0 : index
    %c0_21 = arith.constant 0 : index
    %66 = vector.load %arg3[%c0_20, %c0_21] : memref<32x128xf32, #tpu.memory_space<vmem>>, vector<32x128xf32>
    %cst_22 = arith.constant dense<0.000000e+00> : vector<8x128xf32>
    %67 = tpu.matmul %62, %66, %cst_22 {dimension_numbers = #tpu.dot_dimension_numbers<[1], [0], [0], [1], [0, 0, 1, 1], [], []>} : vector<8x32xf32>, vector<32x128xf32>, vector<8x128xf32> -> vector<8x128xf32>
    %68 = arith.addf %65, %67 : vector<8x128xf32>
    %69 = arith.addf %68, %68 : vector<8x128xf32>
    %70 = arith.select %8, %69, %68 : vector<8x128xi1>, vector<8x128xf32>
    %71 = arith.negf %70 : vector<8x128xf32>
    %72 = math.exp %71 : vector<8x128xf32>
    %cst_23 = arith.constant 1.000000e+00 : f32
    %73 = vector.broadcast %cst_23 : f32 to vector<8x128xf32>
    %74 = arith.addf %73, %72 : vector<8x128xf32>
    %75 = arith.divf %73, %74 : vector<8x128xf32>
    %76 = arith.addf %75, %75 : vector<8x128xf32>
    %cst_24 = arith.constant 1.000000e+00 : f32
    %77 = vector.broadcast %cst_24 : f32 to vector<8x128xf32>
    %78 = arith.subf %76, %77 : vector<8x128xf32>
    %79 = arith.select %8, %78, %75 : vector<8x128xi1>, vector<8x128xf32>
    %80 = vector.extract_strided_slice %79 {offsets = [0, 0], sizes = [8, 32], strides = [1, 1]} : vector<8x128xf32> to vector<8x32xf32>
    %81 = vector.extract_strided_slice %79 {offsets = [0, 32], sizes = [8, 32], strides = [1, 1]} : vector<8x128xf32> to vector<8x32xf32>
    %82 = vector.extract_strided_slice %79 {offsets = [0, 64], sizes = [8, 32], strides = [1, 1]} : vector<8x128xf32> to vector<8x32xf32>
    %83 = vector.extract_strided_slice %79 {offsets = [0, 96], sizes = [8, 32], strides = [1, 1]} : vector<8x128xf32> to vector<8x32xf32>
    %84 = arith.mulf %81, %60 : vector<8x32xf32>
    %85 = arith.mulf %80, %82 : vector<8x32xf32>
    %86 = arith.addf %84, %85 : vector<8x32xf32>
    %87 = math.tanh %86 : vector<8x32xf32>
    %88 = arith.mulf %83, %87 : vector<8x32xf32>
    %c3_i32 = arith.constant 3 : i32
    %89 = arith.index_cast %c3_i32 : i32 to index
    %c0_25 = arith.constant 0 : index
    %c0_26 = arith.constant 0 : index
    %90 = vector.load %arg2[%89, %c0_25, %c0_26] : memref<20x8x128xf32, #tpu.memory_space<vmem>>, vector<1x8x128xf32>
    %91 = vector.shape_cast %90 : vector<1x8x128xf32> to vector<8x128xf32>
    %c0_27 = arith.constant 0 : index
    %c0_28 = arith.constant 0 : index
    %92 = vector.load %arg3[%c0_27, %c0_28] : memref<32x128xf32, #tpu.memory_space<vmem>>, vector<32x128xf32>
    %cst_29 = arith.constant dense<0.000000e+00> : vector<8x128xf32>
    %93 = tpu.matmul %88, %92, %cst_29 {dimension_numbers = #tpu.dot_dimension_numbers<[1], [0], [0], [1], [0, 0, 1, 1], [], []>} : vector<8x32xf32>, vector<32x128xf32>, vector<8x128xf32> -> vector<8x128xf32>
    %94 = arith.addf %91, %93 : vector<8x128xf32>
    %95 = arith.addf %94, %94 : vector<8x128xf32>
    %96 = arith.select %8, %95, %94 : vector<8x128xi1>, vector<8x128xf32>
    %97 = arith.negf %96 : vector<8x128xf32>
    %98 = math.exp %97 : vector<8x128xf32>
    %cst_30 = arith.constant 1.000000e+00 : f32
    %99 = vector.broadcast %cst_30 : f32 to vector<8x128xf32>
    %100 = arith.addf %99, %98 : vector<8x128xf32>
    %101 = arith.divf %99, %100 : vector<8x128xf32>
    %102 = arith.addf %101, %101 : vector<8x128xf32>
    %cst_31 = arith.constant 1.000000e+00 : f32
    %103 = vector.broadcast %cst_31 : f32 to vector<8x128xf32>
    %104 = arith.subf %102, %103 : vector<8x128xf32>
    %105 = arith.select %8, %104, %101 : vector<8x128xi1>, vector<8x128xf32>
    %106 = vector.extract_strided_slice %105 {offsets = [0, 0], sizes = [8, 32], strides = [1, 1]} : vector<8x128xf32> to vector<8x32xf32>
    %107 = vector.extract_strided_slice %105 {offsets = [0, 32], sizes = [8, 32], strides = [1, 1]} : vector<8x128xf32> to vector<8x32xf32>
    %108 = vector.extract_strided_slice %105 {offsets = [0, 64], sizes = [8, 32], strides = [1, 1]} : vector<8x128xf32> to vector<8x32xf32>
    %109 = vector.extract_strided_slice %105 {offsets = [0, 96], sizes = [8, 32], strides = [1, 1]} : vector<8x128xf32> to vector<8x32xf32>
    %110 = arith.mulf %107, %86 : vector<8x32xf32>
    %111 = arith.mulf %106, %108 : vector<8x32xf32>
    %112 = arith.addf %110, %111 : vector<8x32xf32>
    %113 = math.tanh %112 : vector<8x32xf32>
    %114 = arith.mulf %109, %113 : vector<8x32xf32>
    %c4_i32 = arith.constant 4 : i32
    %115 = arith.index_cast %c4_i32 : i32 to index
    %c0_32 = arith.constant 0 : index
    %c0_33 = arith.constant 0 : index
    %116 = vector.load %arg2[%115, %c0_32, %c0_33] : memref<20x8x128xf32, #tpu.memory_space<vmem>>, vector<1x8x128xf32>
    %117 = vector.shape_cast %116 : vector<1x8x128xf32> to vector<8x128xf32>
    %c0_34 = arith.constant 0 : index
    %c0_35 = arith.constant 0 : index
    %118 = vector.load %arg3[%c0_34, %c0_35] : memref<32x128xf32, #tpu.memory_space<vmem>>, vector<32x128xf32>
    %cst_36 = arith.constant dense<0.000000e+00> : vector<8x128xf32>
    %119 = tpu.matmul %114, %118, %cst_36 {dimension_numbers = #tpu.dot_dimension_numbers<[1], [0], [0], [1], [0, 0, 1, 1], [], []>} : vector<8x32xf32>, vector<32x128xf32>, vector<8x128xf32> -> vector<8x128xf32>
    %120 = arith.addf %117, %119 : vector<8x128xf32>
    %121 = arith.addf %120, %120 : vector<8x128xf32>
    %122 = arith.select %8, %121, %120 : vector<8x128xi1>, vector<8x128xf32>
    %123 = arith.negf %122 : vector<8x128xf32>
    %124 = math.exp %123 : vector<8x128xf32>
    %cst_37 = arith.constant 1.000000e+00 : f32
    %125 = vector.broadcast %cst_37 : f32 to vector<8x128xf32>
    %126 = arith.addf %125, %124 : vector<8x128xf32>
    %127 = arith.divf %125, %126 : vector<8x128xf32>
    %128 = arith.addf %127, %127 : vector<8x128xf32>
    %cst_38 = arith.constant 1.000000e+00 : f32
    %129 = vector.broadcast %cst_38 : f32 to vector<8x128xf32>
    %130 = arith.subf %128, %129 : vector<8x128xf32>
    %131 = arith.select %8, %130, %127 : vector<8x128xi1>, vector<8x128xf32>
    %132 = vector.extract_strided_slice %131 {offsets = [0, 0], sizes = [8, 32], strides = [1, 1]} : vector<8x128xf32> to vector<8x32xf32>
    %133 = vector.extract_strided_slice %131 {offsets = [0, 32], sizes = [8, 32], strides = [1, 1]} : vector<8x128xf32> to vector<8x32xf32>
    %134 = vector.extract_strided_slice %131 {offsets = [0, 64], sizes = [8, 32], strides = [1, 1]} : vector<8x128xf32> to vector<8x32xf32>
    %135 = vector.extract_strided_slice %131 {offsets = [0, 96], sizes = [8, 32], strides = [1, 1]} : vector<8x128xf32> to vector<8x32xf32>
    %136 = arith.mulf %133, %112 : vector<8x32xf32>
    %137 = arith.mulf %132, %134 : vector<8x32xf32>
    %138 = arith.addf %136, %137 : vector<8x32xf32>
    %139 = math.tanh %138 : vector<8x32xf32>
    %140 = arith.mulf %135, %139 : vector<8x32xf32>
    %c5_i32 = arith.constant 5 : i32
    %141 = arith.index_cast %c5_i32 : i32 to index
    %c0_39 = arith.constant 0 : index
    %c0_40 = arith.constant 0 : index
    %142 = vector.load %arg2[%141, %c0_39, %c0_40] : memref<20x8x128xf32, #tpu.memory_space<vmem>>, vector<1x8x128xf32>
    %143 = vector.shape_cast %142 : vector<1x8x128xf32> to vector<8x128xf32>
    %c0_41 = arith.constant 0 : index
    %c0_42 = arith.constant 0 : index
    %144 = vector.load %arg3[%c0_41, %c0_42] : memref<32x128xf32, #tpu.memory_space<vmem>>, vector<32x128xf32>
    %cst_43 = arith.constant dense<0.000000e+00> : vector<8x128xf32>
    %145 = tpu.matmul %140, %144, %cst_43 {dimension_numbers = #tpu.dot_dimension_numbers<[1], [0], [0], [1], [0, 0, 1, 1], [], []>} : vector<8x32xf32>, vector<32x128xf32>, vector<8x128xf32> -> vector<8x128xf32>
    %146 = arith.addf %143, %145 : vector<8x128xf32>
    %147 = arith.addf %146, %146 : vector<8x128xf32>
    %148 = arith.select %8, %147, %146 : vector<8x128xi1>, vector<8x128xf32>
    %149 = arith.negf %148 : vector<8x128xf32>
    %150 = math.exp %149 : vector<8x128xf32>
    %cst_44 = arith.constant 1.000000e+00 : f32
    %151 = vector.broadcast %cst_44 : f32 to vector<8x128xf32>
    %152 = arith.addf %151, %150 : vector<8x128xf32>
    %153 = arith.divf %151, %152 : vector<8x128xf32>
    %154 = arith.addf %153, %153 : vector<8x128xf32>
    %cst_45 = arith.constant 1.000000e+00 : f32
    %155 = vector.broadcast %cst_45 : f32 to vector<8x128xf32>
    %156 = arith.subf %154, %155 : vector<8x128xf32>
    %157 = arith.select %8, %156, %153 : vector<8x128xi1>, vector<8x128xf32>
    %158 = vector.extract_strided_slice %157 {offsets = [0, 0], sizes = [8, 32], strides = [1, 1]} : vector<8x128xf32> to vector<8x32xf32>
    %159 = vector.extract_strided_slice %157 {offsets = [0, 32], sizes = [8, 32], strides = [1, 1]} : vector<8x128xf32> to vector<8x32xf32>
    %160 = vector.extract_strided_slice %157 {offsets = [0, 64], sizes = [8, 32], strides = [1, 1]} : vector<8x128xf32> to vector<8x32xf32>
    %161 = vector.extract_strided_slice %157 {offsets = [0, 96], sizes = [8, 32], strides = [1, 1]} : vector<8x128xf32> to vector<8x32xf32>
    %162 = arith.mulf %159, %138 : vector<8x32xf32>
    %163 = arith.mulf %158, %160 : vector<8x32xf32>
    %164 = arith.addf %162, %163 : vector<8x32xf32>
    %165 = math.tanh %164 : vector<8x32xf32>
    %166 = arith.mulf %161, %165 : vector<8x32xf32>
    %c6_i32 = arith.constant 6 : i32
    %167 = arith.index_cast %c6_i32 : i32 to index
    %c0_46 = arith.constant 0 : index
    %c0_47 = arith.constant 0 : index
    %168 = vector.load %arg2[%167, %c0_46, %c0_47] : memref<20x8x128xf32, #tpu.memory_space<vmem>>, vector<1x8x128xf32>
    %169 = vector.shape_cast %168 : vector<1x8x128xf32> to vector<8x128xf32>
    %c0_48 = arith.constant 0 : index
    %c0_49 = arith.constant 0 : index
    %170 = vector.load %arg3[%c0_48, %c0_49] : memref<32x128xf32, #tpu.memory_space<vmem>>, vector<32x128xf32>
    %cst_50 = arith.constant dense<0.000000e+00> : vector<8x128xf32>
    %171 = tpu.matmul %166, %170, %cst_50 {dimension_numbers = #tpu.dot_dimension_numbers<[1], [0], [0], [1], [0, 0, 1, 1], [], []>} : vector<8x32xf32>, vector<32x128xf32>, vector<8x128xf32> -> vector<8x128xf32>
    %172 = arith.addf %169, %171 : vector<8x128xf32>
    %173 = arith.addf %172, %172 : vector<8x128xf32>
    %174 = arith.select %8, %173, %172 : vector<8x128xi1>, vector<8x128xf32>
    %175 = arith.negf %174 : vector<8x128xf32>
    %176 = math.exp %175 : vector<8x128xf32>
    %cst_51 = arith.constant 1.000000e+00 : f32
    %177 = vector.broadcast %cst_51 : f32 to vector<8x128xf32>
    %178 = arith.addf %177, %176 : vector<8x128xf32>
    %179 = arith.divf %177, %178 : vector<8x128xf32>
    %180 = arith.addf %179, %179 : vector<8x128xf32>
    %cst_52 = arith.constant 1.000000e+00 : f32
    %181 = vector.broadcast %cst_52 : f32 to vector<8x128xf32>
    %182 = arith.subf %180, %181 : vector<8x128xf32>
    %183 = arith.select %8, %182, %179 : vector<8x128xi1>, vector<8x128xf32>
    %184 = vector.extract_strided_slice %183 {offsets = [0, 0], sizes = [8, 32], strides = [1, 1]} : vector<8x128xf32> to vector<8x32xf32>
    %185 = vector.extract_strided_slice %183 {offsets = [0, 32], sizes = [8, 32], strides = [1, 1]} : vector<8x128xf32> to vector<8x32xf32>
    %186 = vector.extract_strided_slice %183 {offsets = [0, 64], sizes = [8, 32], strides = [1, 1]} : vector<8x128xf32> to vector<8x32xf32>
    %187 = vector.extract_strided_slice %183 {offsets = [0, 96], sizes = [8, 32], strides = [1, 1]} : vector<8x128xf32> to vector<8x32xf32>
    %188 = arith.mulf %185, %164 : vector<8x32xf32>
    %189 = arith.mulf %184, %186 : vector<8x32xf32>
    %190 = arith.addf %188, %189 : vector<8x32xf32>
    %191 = math.tanh %190 : vector<8x32xf32>
    %192 = arith.mulf %187, %191 : vector<8x32xf32>
    %c7_i32 = arith.constant 7 : i32
    %193 = arith.index_cast %c7_i32 : i32 to index
    %c0_53 = arith.constant 0 : index
    %c0_54 = arith.constant 0 : index
    %194 = vector.load %arg2[%193, %c0_53, %c0_54] : memref<20x8x128xf32, #tpu.memory_space<vmem>>, vector<1x8x128xf32>
    %195 = vector.shape_cast %194 : vector<1x8x128xf32> to vector<8x128xf32>
    %c0_55 = arith.constant 0 : index
    %c0_56 = arith.constant 0 : index
    %196 = vector.load %arg3[%c0_55, %c0_56] : memref<32x128xf32, #tpu.memory_space<vmem>>, vector<32x128xf32>
    %cst_57 = arith.constant dense<0.000000e+00> : vector<8x128xf32>
    %197 = tpu.matmul %192, %196, %cst_57 {dimension_numbers = #tpu.dot_dimension_numbers<[1], [0], [0], [1], [0, 0, 1, 1], [], []>} : vector<8x32xf32>, vector<32x128xf32>, vector<8x128xf32> -> vector<8x128xf32>
    %198 = arith.addf %195, %197 : vector<8x128xf32>
    %199 = arith.addf %198, %198 : vector<8x128xf32>
    %200 = arith.select %8, %199, %198 : vector<8x128xi1>, vector<8x128xf32>
    %201 = arith.negf %200 : vector<8x128xf32>
    %202 = math.exp %201 : vector<8x128xf32>
    %cst_58 = arith.constant 1.000000e+00 : f32
    %203 = vector.broadcast %cst_58 : f32 to vector<8x128xf32>
    %204 = arith.addf %203, %202 : vector<8x128xf32>
    %205 = arith.divf %203, %204 : vector<8x128xf32>
    %206 = arith.addf %205, %205 : vector<8x128xf32>
    %cst_59 = arith.constant 1.000000e+00 : f32
    %207 = vector.broadcast %cst_59 : f32 to vector<8x128xf32>
    %208 = arith.subf %206, %207 : vector<8x128xf32>
    %209 = arith.select %8, %208, %205 : vector<8x128xi1>, vector<8x128xf32>
    %210 = vector.extract_strided_slice %209 {offsets = [0, 0], sizes = [8, 32], strides = [1, 1]} : vector<8x128xf32> to vector<8x32xf32>
    %211 = vector.extract_strided_slice %209 {offsets = [0, 32], sizes = [8, 32], strides = [1, 1]} : vector<8x128xf32> to vector<8x32xf32>
    %212 = vector.extract_strided_slice %209 {offsets = [0, 64], sizes = [8, 32], strides = [1, 1]} : vector<8x128xf32> to vector<8x32xf32>
    %213 = vector.extract_strided_slice %209 {offsets = [0, 96], sizes = [8, 32], strides = [1, 1]} : vector<8x128xf32> to vector<8x32xf32>
    %214 = arith.mulf %211, %190 : vector<8x32xf32>
    %215 = arith.mulf %210, %212 : vector<8x32xf32>
    %216 = arith.addf %214, %215 : vector<8x32xf32>
    %217 = math.tanh %216 : vector<8x32xf32>
    %218 = arith.mulf %213, %217 : vector<8x32xf32>
    %c8_i32 = arith.constant 8 : i32
    %219 = arith.index_cast %c8_i32 : i32 to index
    %c0_60 = arith.constant 0 : index
    %c0_61 = arith.constant 0 : index
    %220 = vector.load %arg2[%219, %c0_60, %c0_61] : memref<20x8x128xf32, #tpu.memory_space<vmem>>, vector<1x8x128xf32>
    %221 = vector.shape_cast %220 : vector<1x8x128xf32> to vector<8x128xf32>
    %c0_62 = arith.constant 0 : index
    %c0_63 = arith.constant 0 : index
    %222 = vector.load %arg3[%c0_62, %c0_63] : memref<32x128xf32, #tpu.memory_space<vmem>>, vector<32x128xf32>
    %cst_64 = arith.constant dense<0.000000e+00> : vector<8x128xf32>
    %223 = tpu.matmul %218, %222, %cst_64 {dimension_numbers = #tpu.dot_dimension_numbers<[1], [0], [0], [1], [0, 0, 1, 1], [], []>} : vector<8x32xf32>, vector<32x128xf32>, vector<8x128xf32> -> vector<8x128xf32>
    %224 = arith.addf %221, %223 : vector<8x128xf32>
    %225 = arith.addf %224, %224 : vector<8x128xf32>
    %226 = arith.select %8, %225, %224 : vector<8x128xi1>, vector<8x128xf32>
    %227 = arith.negf %226 : vector<8x128xf32>
    %228 = math.exp %227 : vector<8x128xf32>
    %cst_65 = arith.constant 1.000000e+00 : f32
    %229 = vector.broadcast %cst_65 : f32 to vector<8x128xf32>
    %230 = arith.addf %229, %228 : vector<8x128xf32>
    %231 = arith.divf %229, %230 : vector<8x128xf32>
    %232 = arith.addf %231, %231 : vector<8x128xf32>
    %cst_66 = arith.constant 1.000000e+00 : f32
    %233 = vector.broadcast %cst_66 : f32 to vector<8x128xf32>
    %234 = arith.subf %232, %233 : vector<8x128xf32>
    %235 = arith.select %8, %234, %231 : vector<8x128xi1>, vector<8x128xf32>
    %236 = vector.extract_strided_slice %235 {offsets = [0, 0], sizes = [8, 32], strides = [1, 1]} : vector<8x128xf32> to vector<8x32xf32>
    %237 = vector.extract_strided_slice %235 {offsets = [0, 32], sizes = [8, 32], strides = [1, 1]} : vector<8x128xf32> to vector<8x32xf32>
    %238 = vector.extract_strided_slice %235 {offsets = [0, 64], sizes = [8, 32], strides = [1, 1]} : vector<8x128xf32> to vector<8x32xf32>
    %239 = vector.extract_strided_slice %235 {offsets = [0, 96], sizes = [8, 32], strides = [1, 1]} : vector<8x128xf32> to vector<8x32xf32>
    %240 = arith.mulf %237, %216 : vector<8x32xf32>
    %241 = arith.mulf %236, %238 : vector<8x32xf32>
    %242 = arith.addf %240, %241 : vector<8x32xf32>
    %243 = math.tanh %242 : vector<8x32xf32>
    %244 = arith.mulf %239, %243 : vector<8x32xf32>
    %c9_i32 = arith.constant 9 : i32
    %245 = arith.index_cast %c9_i32 : i32 to index
    %c0_67 = arith.constant 0 : index
    %c0_68 = arith.constant 0 : index
    %246 = vector.load %arg2[%245, %c0_67, %c0_68] : memref<20x8x128xf32, #tpu.memory_space<vmem>>, vector<1x8x128xf32>
    %247 = vector.shape_cast %246 : vector<1x8x128xf32> to vector<8x128xf32>
    %c0_69 = arith.constant 0 : index
    %c0_70 = arith.constant 0 : index
    %248 = vector.load %arg3[%c0_69, %c0_70] : memref<32x128xf32, #tpu.memory_space<vmem>>, vector<32x128xf32>
    %cst_71 = arith.constant dense<0.000000e+00> : vector<8x128xf32>
    %249 = tpu.matmul %244, %248, %cst_71 {dimension_numbers = #tpu.dot_dimension_numbers<[1], [0], [0], [1], [0, 0, 1, 1], [], []>} : vector<8x32xf32>, vector<32x128xf32>, vector<8x128xf32> -> vector<8x128xf32>
    %250 = arith.addf %247, %249 : vector<8x128xf32>
    %251 = arith.addf %250, %250 : vector<8x128xf32>
    %252 = arith.select %8, %251, %250 : vector<8x128xi1>, vector<8x128xf32>
    %253 = arith.negf %252 : vector<8x128xf32>
    %254 = math.exp %253 : vector<8x128xf32>
    %cst_72 = arith.constant 1.000000e+00 : f32
    %255 = vector.broadcast %cst_72 : f32 to vector<8x128xf32>
    %256 = arith.addf %255, %254 : vector<8x128xf32>
    %257 = arith.divf %255, %256 : vector<8x128xf32>
    %258 = arith.addf %257, %257 : vector<8x128xf32>
    %cst_73 = arith.constant 1.000000e+00 : f32
    %259 = vector.broadcast %cst_73 : f32 to vector<8x128xf32>
    %260 = arith.subf %258, %259 : vector<8x128xf32>
    %261 = arith.select %8, %260, %257 : vector<8x128xi1>, vector<8x128xf32>
    %262 = vector.extract_strided_slice %261 {offsets = [0, 0], sizes = [8, 32], strides = [1, 1]} : vector<8x128xf32> to vector<8x32xf32>
    %263 = vector.extract_strided_slice %261 {offsets = [0, 32], sizes = [8, 32], strides = [1, 1]} : vector<8x128xf32> to vector<8x32xf32>
    %264 = vector.extract_strided_slice %261 {offsets = [0, 64], sizes = [8, 32], strides = [1, 1]} : vector<8x128xf32> to vector<8x32xf32>
    %265 = vector.extract_strided_slice %261 {offsets = [0, 96], sizes = [8, 32], strides = [1, 1]} : vector<8x128xf32> to vector<8x32xf32>
    %266 = arith.mulf %263, %242 : vector<8x32xf32>
    %267 = arith.mulf %262, %264 : vector<8x32xf32>
    %268 = arith.addf %266, %267 : vector<8x32xf32>
    %269 = math.tanh %268 : vector<8x32xf32>
    %270 = arith.mulf %265, %269 : vector<8x32xf32>
    %c10_i32 = arith.constant 10 : i32
    %271 = arith.index_cast %c10_i32 : i32 to index
    %c0_74 = arith.constant 0 : index
    %c0_75 = arith.constant 0 : index
    %272 = vector.load %arg2[%271, %c0_74, %c0_75] : memref<20x8x128xf32, #tpu.memory_space<vmem>>, vector<1x8x128xf32>
    %273 = vector.shape_cast %272 : vector<1x8x128xf32> to vector<8x128xf32>
    %c0_76 = arith.constant 0 : index
    %c0_77 = arith.constant 0 : index
    %274 = vector.load %arg3[%c0_76, %c0_77] : memref<32x128xf32, #tpu.memory_space<vmem>>, vector<32x128xf32>
    %cst_78 = arith.constant dense<0.000000e+00> : vector<8x128xf32>
    %275 = tpu.matmul %270, %274, %cst_78 {dimension_numbers = #tpu.dot_dimension_numbers<[1], [0], [0], [1], [0, 0, 1, 1], [], []>} : vector<8x32xf32>, vector<32x128xf32>, vector<8x128xf32> -> vector<8x128xf32>
    %276 = arith.addf %273, %275 : vector<8x128xf32>
    %277 = arith.addf %276, %276 : vector<8x128xf32>
    %278 = arith.select %8, %277, %276 : vector<8x128xi1>, vector<8x128xf32>
    %279 = arith.negf %278 : vector<8x128xf32>
    %280 = math.exp %279 : vector<8x128xf32>
    %cst_79 = arith.constant 1.000000e+00 : f32
    %281 = vector.broadcast %cst_79 : f32 to vector<8x128xf32>
    %282 = arith.addf %281, %280 : vector<8x128xf32>
    %283 = arith.divf %281, %282 : vector<8x128xf32>
    %284 = arith.addf %283, %283 : vector<8x128xf32>
    %cst_80 = arith.constant 1.000000e+00 : f32
    %285 = vector.broadcast %cst_80 : f32 to vector<8x128xf32>
    %286 = arith.subf %284, %285 : vector<8x128xf32>
    %287 = arith.select %8, %286, %283 : vector<8x128xi1>, vector<8x128xf32>
    %288 = vector.extract_strided_slice %287 {offsets = [0, 0], sizes = [8, 32], strides = [1, 1]} : vector<8x128xf32> to vector<8x32xf32>
    %289 = vector.extract_strided_slice %287 {offsets = [0, 32], sizes = [8, 32], strides = [1, 1]} : vector<8x128xf32> to vector<8x32xf32>
    %290 = vector.extract_strided_slice %287 {offsets = [0, 64], sizes = [8, 32], strides = [1, 1]} : vector<8x128xf32> to vector<8x32xf32>
    %291 = vector.extract_strided_slice %287 {offsets = [0, 96], sizes = [8, 32], strides = [1, 1]} : vector<8x128xf32> to vector<8x32xf32>
    %292 = arith.mulf %289, %268 : vector<8x32xf32>
    %293 = arith.mulf %288, %290 : vector<8x32xf32>
    %294 = arith.addf %292, %293 : vector<8x32xf32>
    %295 = math.tanh %294 : vector<8x32xf32>
    %296 = arith.mulf %291, %295 : vector<8x32xf32>
    %c11_i32 = arith.constant 11 : i32
    %297 = arith.index_cast %c11_i32 : i32 to index
    %c0_81 = arith.constant 0 : index
    %c0_82 = arith.constant 0 : index
    %298 = vector.load %arg2[%297, %c0_81, %c0_82] : memref<20x8x128xf32, #tpu.memory_space<vmem>>, vector<1x8x128xf32>
    %299 = vector.shape_cast %298 : vector<1x8x128xf32> to vector<8x128xf32>
    %c0_83 = arith.constant 0 : index
    %c0_84 = arith.constant 0 : index
    %300 = vector.load %arg3[%c0_83, %c0_84] : memref<32x128xf32, #tpu.memory_space<vmem>>, vector<32x128xf32>
    %cst_85 = arith.constant dense<0.000000e+00> : vector<8x128xf32>
    %301 = tpu.matmul %296, %300, %cst_85 {dimension_numbers = #tpu.dot_dimension_numbers<[1], [0], [0], [1], [0, 0, 1, 1], [], []>} : vector<8x32xf32>, vector<32x128xf32>, vector<8x128xf32> -> vector<8x128xf32>
    %302 = arith.addf %299, %301 : vector<8x128xf32>
    %303 = arith.addf %302, %302 : vector<8x128xf32>
    %304 = arith.select %8, %303, %302 : vector<8x128xi1>, vector<8x128xf32>
    %305 = arith.negf %304 : vector<8x128xf32>
    %306 = math.exp %305 : vector<8x128xf32>
    %cst_86 = arith.constant 1.000000e+00 : f32
    %307 = vector.broadcast %cst_86 : f32 to vector<8x128xf32>
    %308 = arith.addf %307, %306 : vector<8x128xf32>
    %309 = arith.divf %307, %308 : vector<8x128xf32>
    %310 = arith.addf %309, %309 : vector<8x128xf32>
    %cst_87 = arith.constant 1.000000e+00 : f32
    %311 = vector.broadcast %cst_87 : f32 to vector<8x128xf32>
    %312 = arith.subf %310, %311 : vector<8x128xf32>
    %313 = arith.select %8, %312, %309 : vector<8x128xi1>, vector<8x128xf32>
    %314 = vector.extract_strided_slice %313 {offsets = [0, 0], sizes = [8, 32], strides = [1, 1]} : vector<8x128xf32> to vector<8x32xf32>
    %315 = vector.extract_strided_slice %313 {offsets = [0, 32], sizes = [8, 32], strides = [1, 1]} : vector<8x128xf32> to vector<8x32xf32>
    %316 = vector.extract_strided_slice %313 {offsets = [0, 64], sizes = [8, 32], strides = [1, 1]} : vector<8x128xf32> to vector<8x32xf32>
    %317 = vector.extract_strided_slice %313 {offsets = [0, 96], sizes = [8, 32], strides = [1, 1]} : vector<8x128xf32> to vector<8x32xf32>
    %318 = arith.mulf %315, %294 : vector<8x32xf32>
    %319 = arith.mulf %314, %316 : vector<8x32xf32>
    %320 = arith.addf %318, %319 : vector<8x32xf32>
    %321 = math.tanh %320 : vector<8x32xf32>
    %322 = arith.mulf %317, %321 : vector<8x32xf32>
    %c12_i32 = arith.constant 12 : i32
    %323 = arith.index_cast %c12_i32 : i32 to index
    %c0_88 = arith.constant 0 : index
    %c0_89 = arith.constant 0 : index
    %324 = vector.load %arg2[%323, %c0_88, %c0_89] : memref<20x8x128xf32, #tpu.memory_space<vmem>>, vector<1x8x128xf32>
    %325 = vector.shape_cast %324 : vector<1x8x128xf32> to vector<8x128xf32>
    %c0_90 = arith.constant 0 : index
    %c0_91 = arith.constant 0 : index
    %326 = vector.load %arg3[%c0_90, %c0_91] : memref<32x128xf32, #tpu.memory_space<vmem>>, vector<32x128xf32>
    %cst_92 = arith.constant dense<0.000000e+00> : vector<8x128xf32>
    %327 = tpu.matmul %322, %326, %cst_92 {dimension_numbers = #tpu.dot_dimension_numbers<[1], [0], [0], [1], [0, 0, 1, 1], [], []>} : vector<8x32xf32>, vector<32x128xf32>, vector<8x128xf32> -> vector<8x128xf32>
    %328 = arith.addf %325, %327 : vector<8x128xf32>
    %329 = arith.addf %328, %328 : vector<8x128xf32>
    %330 = arith.select %8, %329, %328 : vector<8x128xi1>, vector<8x128xf32>
    %331 = arith.negf %330 : vector<8x128xf32>
    %332 = math.exp %331 : vector<8x128xf32>
    %cst_93 = arith.constant 1.000000e+00 : f32
    %333 = vector.broadcast %cst_93 : f32 to vector<8x128xf32>
    %334 = arith.addf %333, %332 : vector<8x128xf32>
    %335 = arith.divf %333, %334 : vector<8x128xf32>
    %336 = arith.addf %335, %335 : vector<8x128xf32>
    %cst_94 = arith.constant 1.000000e+00 : f32
    %337 = vector.broadcast %cst_94 : f32 to vector<8x128xf32>
    %338 = arith.subf %336, %337 : vector<8x128xf32>
    %339 = arith.select %8, %338, %335 : vector<8x128xi1>, vector<8x128xf32>
    %340 = vector.extract_strided_slice %339 {offsets = [0, 0], sizes = [8, 32], strides = [1, 1]} : vector<8x128xf32> to vector<8x32xf32>
    %341 = vector.extract_strided_slice %339 {offsets = [0, 32], sizes = [8, 32], strides = [1, 1]} : vector<8x128xf32> to vector<8x32xf32>
    %342 = vector.extract_strided_slice %339 {offsets = [0, 64], sizes = [8, 32], strides = [1, 1]} : vector<8x128xf32> to vector<8x32xf32>
    %343 = vector.extract_strided_slice %339 {offsets = [0, 96], sizes = [8, 32], strides = [1, 1]} : vector<8x128xf32> to vector<8x32xf32>
    %344 = arith.mulf %341, %320 : vector<8x32xf32>
    %345 = arith.mulf %340, %342 : vector<8x32xf32>
    %346 = arith.addf %344, %345 : vector<8x32xf32>
    %347 = math.tanh %346 : vector<8x32xf32>
    %348 = arith.mulf %343, %347 : vector<8x32xf32>
    %c13_i32 = arith.constant 13 : i32
    %349 = arith.index_cast %c13_i32 : i32 to index
    %c0_95 = arith.constant 0 : index
    %c0_96 = arith.constant 0 : index
    %350 = vector.load %arg2[%349, %c0_95, %c0_96] : memref<20x8x128xf32, #tpu.memory_space<vmem>>, vector<1x8x128xf32>
    %351 = vector.shape_cast %350 : vector<1x8x128xf32> to vector<8x128xf32>
    %c0_97 = arith.constant 0 : index
    %c0_98 = arith.constant 0 : index
    %352 = vector.load %arg3[%c0_97, %c0_98] : memref<32x128xf32, #tpu.memory_space<vmem>>, vector<32x128xf32>
    %cst_99 = arith.constant dense<0.000000e+00> : vector<8x128xf32>
    %353 = tpu.matmul %348, %352, %cst_99 {dimension_numbers = #tpu.dot_dimension_numbers<[1], [0], [0], [1], [0, 0, 1, 1], [], []>} : vector<8x32xf32>, vector<32x128xf32>, vector<8x128xf32> -> vector<8x128xf32>
    %354 = arith.addf %351, %353 : vector<8x128xf32>
    %355 = arith.addf %354, %354 : vector<8x128xf32>
    %356 = arith.select %8, %355, %354 : vector<8x128xi1>, vector<8x128xf32>
    %357 = arith.negf %356 : vector<8x128xf32>
    %358 = math.exp %357 : vector<8x128xf32>
    %cst_100 = arith.constant 1.000000e+00 : f32
    %359 = vector.broadcast %cst_100 : f32 to vector<8x128xf32>
    %360 = arith.addf %359, %358 : vector<8x128xf32>
    %361 = arith.divf %359, %360 : vector<8x128xf32>
    %362 = arith.addf %361, %361 : vector<8x128xf32>
    %cst_101 = arith.constant 1.000000e+00 : f32
    %363 = vector.broadcast %cst_101 : f32 to vector<8x128xf32>
    %364 = arith.subf %362, %363 : vector<8x128xf32>
    %365 = arith.select %8, %364, %361 : vector<8x128xi1>, vector<8x128xf32>
    %366 = vector.extract_strided_slice %365 {offsets = [0, 0], sizes = [8, 32], strides = [1, 1]} : vector<8x128xf32> to vector<8x32xf32>
    %367 = vector.extract_strided_slice %365 {offsets = [0, 32], sizes = [8, 32], strides = [1, 1]} : vector<8x128xf32> to vector<8x32xf32>
    %368 = vector.extract_strided_slice %365 {offsets = [0, 64], sizes = [8, 32], strides = [1, 1]} : vector<8x128xf32> to vector<8x32xf32>
    %369 = vector.extract_strided_slice %365 {offsets = [0, 96], sizes = [8, 32], strides = [1, 1]} : vector<8x128xf32> to vector<8x32xf32>
    %370 = arith.mulf %367, %346 : vector<8x32xf32>
    %371 = arith.mulf %366, %368 : vector<8x32xf32>
    %372 = arith.addf %370, %371 : vector<8x32xf32>
    %373 = math.tanh %372 : vector<8x32xf32>
    %374 = arith.mulf %369, %373 : vector<8x32xf32>
    %c14_i32 = arith.constant 14 : i32
    %375 = arith.index_cast %c14_i32 : i32 to index
    %c0_102 = arith.constant 0 : index
    %c0_103 = arith.constant 0 : index
    %376 = vector.load %arg2[%375, %c0_102, %c0_103] : memref<20x8x128xf32, #tpu.memory_space<vmem>>, vector<1x8x128xf32>
    %377 = vector.shape_cast %376 : vector<1x8x128xf32> to vector<8x128xf32>
    %c0_104 = arith.constant 0 : index
    %c0_105 = arith.constant 0 : index
    %378 = vector.load %arg3[%c0_104, %c0_105] : memref<32x128xf32, #tpu.memory_space<vmem>>, vector<32x128xf32>
    %cst_106 = arith.constant dense<0.000000e+00> : vector<8x128xf32>
    %379 = tpu.matmul %374, %378, %cst_106 {dimension_numbers = #tpu.dot_dimension_numbers<[1], [0], [0], [1], [0, 0, 1, 1], [], []>} : vector<8x32xf32>, vector<32x128xf32>, vector<8x128xf32> -> vector<8x128xf32>
    %380 = arith.addf %377, %379 : vector<8x128xf32>
    %381 = arith.addf %380, %380 : vector<8x128xf32>
    %382 = arith.select %8, %381, %380 : vector<8x128xi1>, vector<8x128xf32>
    %383 = arith.negf %382 : vector<8x128xf32>
    %384 = math.exp %383 : vector<8x128xf32>
    %cst_107 = arith.constant 1.000000e+00 : f32
    %385 = vector.broadcast %cst_107 : f32 to vector<8x128xf32>
    %386 = arith.addf %385, %384 : vector<8x128xf32>
    %387 = arith.divf %385, %386 : vector<8x128xf32>
    %388 = arith.addf %387, %387 : vector<8x128xf32>
    %cst_108 = arith.constant 1.000000e+00 : f32
    %389 = vector.broadcast %cst_108 : f32 to vector<8x128xf32>
    %390 = arith.subf %388, %389 : vector<8x128xf32>
    %391 = arith.select %8, %390, %387 : vector<8x128xi1>, vector<8x128xf32>
    %392 = vector.extract_strided_slice %391 {offsets = [0, 0], sizes = [8, 32], strides = [1, 1]} : vector<8x128xf32> to vector<8x32xf32>
    %393 = vector.extract_strided_slice %391 {offsets = [0, 32], sizes = [8, 32], strides = [1, 1]} : vector<8x128xf32> to vector<8x32xf32>
    %394 = vector.extract_strided_slice %391 {offsets = [0, 64], sizes = [8, 32], strides = [1, 1]} : vector<8x128xf32> to vector<8x32xf32>
    %395 = vector.extract_strided_slice %391 {offsets = [0, 96], sizes = [8, 32], strides = [1, 1]} : vector<8x128xf32> to vector<8x32xf32>
    %396 = arith.mulf %393, %372 : vector<8x32xf32>
    %397 = arith.mulf %392, %394 : vector<8x32xf32>
    %398 = arith.addf %396, %397 : vector<8x32xf32>
    %399 = math.tanh %398 : vector<8x32xf32>
    %400 = arith.mulf %395, %399 : vector<8x32xf32>
    %c15_i32 = arith.constant 15 : i32
    %401 = arith.index_cast %c15_i32 : i32 to index
    %c0_109 = arith.constant 0 : index
    %c0_110 = arith.constant 0 : index
    %402 = vector.load %arg2[%401, %c0_109, %c0_110] : memref<20x8x128xf32, #tpu.memory_space<vmem>>, vector<1x8x128xf32>
    %403 = vector.shape_cast %402 : vector<1x8x128xf32> to vector<8x128xf32>
    %c0_111 = arith.constant 0 : index
    %c0_112 = arith.constant 0 : index
    %404 = vector.load %arg3[%c0_111, %c0_112] : memref<32x128xf32, #tpu.memory_space<vmem>>, vector<32x128xf32>
    %cst_113 = arith.constant dense<0.000000e+00> : vector<8x128xf32>
    %405 = tpu.matmul %400, %404, %cst_113 {dimension_numbers = #tpu.dot_dimension_numbers<[1], [0], [0], [1], [0, 0, 1, 1], [], []>} : vector<8x32xf32>, vector<32x128xf32>, vector<8x128xf32> -> vector<8x128xf32>
    %406 = arith.addf %403, %405 : vector<8x128xf32>
    %407 = arith.addf %406, %406 : vector<8x128xf32>
    %408 = arith.select %8, %407, %406 : vector<8x128xi1>, vector<8x128xf32>
    %409 = arith.negf %408 : vector<8x128xf32>
    %410 = math.exp %409 : vector<8x128xf32>
    %cst_114 = arith.constant 1.000000e+00 : f32
    %411 = vector.broadcast %cst_114 : f32 to vector<8x128xf32>
    %412 = arith.addf %411, %410 : vector<8x128xf32>
    %413 = arith.divf %411, %412 : vector<8x128xf32>
    %414 = arith.addf %413, %413 : vector<8x128xf32>
    %cst_115 = arith.constant 1.000000e+00 : f32
    %415 = vector.broadcast %cst_115 : f32 to vector<8x128xf32>
    %416 = arith.subf %414, %415 : vector<8x128xf32>
    %417 = arith.select %8, %416, %413 : vector<8x128xi1>, vector<8x128xf32>
    %418 = vector.extract_strided_slice %417 {offsets = [0, 0], sizes = [8, 32], strides = [1, 1]} : vector<8x128xf32> to vector<8x32xf32>
    %419 = vector.extract_strided_slice %417 {offsets = [0, 32], sizes = [8, 32], strides = [1, 1]} : vector<8x128xf32> to vector<8x32xf32>
    %420 = vector.extract_strided_slice %417 {offsets = [0, 64], sizes = [8, 32], strides = [1, 1]} : vector<8x128xf32> to vector<8x32xf32>
    %421 = vector.extract_strided_slice %417 {offsets = [0, 96], sizes = [8, 32], strides = [1, 1]} : vector<8x128xf32> to vector<8x32xf32>
    %422 = arith.mulf %419, %398 : vector<8x32xf32>
    %423 = arith.mulf %418, %420 : vector<8x32xf32>
    %424 = arith.addf %422, %423 : vector<8x32xf32>
    %425 = math.tanh %424 : vector<8x32xf32>
    %426 = arith.mulf %421, %425 : vector<8x32xf32>
    %c16_i32 = arith.constant 16 : i32
    %427 = arith.index_cast %c16_i32 : i32 to index
    %c0_116 = arith.constant 0 : index
    %c0_117 = arith.constant 0 : index
    %428 = vector.load %arg2[%427, %c0_116, %c0_117] : memref<20x8x128xf32, #tpu.memory_space<vmem>>, vector<1x8x128xf32>
    %429 = vector.shape_cast %428 : vector<1x8x128xf32> to vector<8x128xf32>
    %c0_118 = arith.constant 0 : index
    %c0_119 = arith.constant 0 : index
    %430 = vector.load %arg3[%c0_118, %c0_119] : memref<32x128xf32, #tpu.memory_space<vmem>>, vector<32x128xf32>
    %cst_120 = arith.constant dense<0.000000e+00> : vector<8x128xf32>
    %431 = tpu.matmul %426, %430, %cst_120 {dimension_numbers = #tpu.dot_dimension_numbers<[1], [0], [0], [1], [0, 0, 1, 1], [], []>} : vector<8x32xf32>, vector<32x128xf32>, vector<8x128xf32> -> vector<8x128xf32>
    %432 = arith.addf %429, %431 : vector<8x128xf32>
    %433 = arith.addf %432, %432 : vector<8x128xf32>
    %434 = arith.select %8, %433, %432 : vector<8x128xi1>, vector<8x128xf32>
    %435 = arith.negf %434 : vector<8x128xf32>
    %436 = math.exp %435 : vector<8x128xf32>
    %cst_121 = arith.constant 1.000000e+00 : f32
    %437 = vector.broadcast %cst_121 : f32 to vector<8x128xf32>
    %438 = arith.addf %437, %436 : vector<8x128xf32>
    %439 = arith.divf %437, %438 : vector<8x128xf32>
    %440 = arith.addf %439, %439 : vector<8x128xf32>
    %cst_122 = arith.constant 1.000000e+00 : f32
    %441 = vector.broadcast %cst_122 : f32 to vector<8x128xf32>
    %442 = arith.subf %440, %441 : vector<8x128xf32>
    %443 = arith.select %8, %442, %439 : vector<8x128xi1>, vector<8x128xf32>
    %444 = vector.extract_strided_slice %443 {offsets = [0, 0], sizes = [8, 32], strides = [1, 1]} : vector<8x128xf32> to vector<8x32xf32>
    %445 = vector.extract_strided_slice %443 {offsets = [0, 32], sizes = [8, 32], strides = [1, 1]} : vector<8x128xf32> to vector<8x32xf32>
    %446 = vector.extract_strided_slice %443 {offsets = [0, 64], sizes = [8, 32], strides = [1, 1]} : vector<8x128xf32> to vector<8x32xf32>
    %447 = vector.extract_strided_slice %443 {offsets = [0, 96], sizes = [8, 32], strides = [1, 1]} : vector<8x128xf32> to vector<8x32xf32>
    %448 = arith.mulf %445, %424 : vector<8x32xf32>
    %449 = arith.mulf %444, %446 : vector<8x32xf32>
    %450 = arith.addf %448, %449 : vector<8x32xf32>
    %451 = math.tanh %450 : vector<8x32xf32>
    %452 = arith.mulf %447, %451 : vector<8x32xf32>
    %c17_i32 = arith.constant 17 : i32
    %453 = arith.index_cast %c17_i32 : i32 to index
    %c0_123 = arith.constant 0 : index
    %c0_124 = arith.constant 0 : index
    %454 = vector.load %arg2[%453, %c0_123, %c0_124] : memref<20x8x128xf32, #tpu.memory_space<vmem>>, vector<1x8x128xf32>
    %455 = vector.shape_cast %454 : vector<1x8x128xf32> to vector<8x128xf32>
    %c0_125 = arith.constant 0 : index
    %c0_126 = arith.constant 0 : index
    %456 = vector.load %arg3[%c0_125, %c0_126] : memref<32x128xf32, #tpu.memory_space<vmem>>, vector<32x128xf32>
    %cst_127 = arith.constant dense<0.000000e+00> : vector<8x128xf32>
    %457 = tpu.matmul %452, %456, %cst_127 {dimension_numbers = #tpu.dot_dimension_numbers<[1], [0], [0], [1], [0, 0, 1, 1], [], []>} : vector<8x32xf32>, vector<32x128xf32>, vector<8x128xf32> -> vector<8x128xf32>
    %458 = arith.addf %455, %457 : vector<8x128xf32>
    %459 = arith.addf %458, %458 : vector<8x128xf32>
    %460 = arith.select %8, %459, %458 : vector<8x128xi1>, vector<8x128xf32>
    %461 = arith.negf %460 : vector<8x128xf32>
    %462 = math.exp %461 : vector<8x128xf32>
    %cst_128 = arith.constant 1.000000e+00 : f32
    %463 = vector.broadcast %cst_128 : f32 to vector<8x128xf32>
    %464 = arith.addf %463, %462 : vector<8x128xf32>
    %465 = arith.divf %463, %464 : vector<8x128xf32>
    %466 = arith.addf %465, %465 : vector<8x128xf32>
    %cst_129 = arith.constant 1.000000e+00 : f32
    %467 = vector.broadcast %cst_129 : f32 to vector<8x128xf32>
    %468 = arith.subf %466, %467 : vector<8x128xf32>
    %469 = arith.select %8, %468, %465 : vector<8x128xi1>, vector<8x128xf32>
    %470 = vector.extract_strided_slice %469 {offsets = [0, 0], sizes = [8, 32], strides = [1, 1]} : vector<8x128xf32> to vector<8x32xf32>
    %471 = vector.extract_strided_slice %469 {offsets = [0, 32], sizes = [8, 32], strides = [1, 1]} : vector<8x128xf32> to vector<8x32xf32>
    %472 = vector.extract_strided_slice %469 {offsets = [0, 64], sizes = [8, 32], strides = [1, 1]} : vector<8x128xf32> to vector<8x32xf32>
    %473 = vector.extract_strided_slice %469 {offsets = [0, 96], sizes = [8, 32], strides = [1, 1]} : vector<8x128xf32> to vector<8x32xf32>
    %474 = arith.mulf %471, %450 : vector<8x32xf32>
    %475 = arith.mulf %470, %472 : vector<8x32xf32>
    %476 = arith.addf %474, %475 : vector<8x32xf32>
    %477 = math.tanh %476 : vector<8x32xf32>
    %478 = arith.mulf %473, %477 : vector<8x32xf32>
    %c18_i32 = arith.constant 18 : i32
    %479 = arith.index_cast %c18_i32 : i32 to index
    %c0_130 = arith.constant 0 : index
    %c0_131 = arith.constant 0 : index
    %480 = vector.load %arg2[%479, %c0_130, %c0_131] : memref<20x8x128xf32, #tpu.memory_space<vmem>>, vector<1x8x128xf32>
    %481 = vector.shape_cast %480 : vector<1x8x128xf32> to vector<8x128xf32>
    %c0_132 = arith.constant 0 : index
    %c0_133 = arith.constant 0 : index
    %482 = vector.load %arg3[%c0_132, %c0_133] : memref<32x128xf32, #tpu.memory_space<vmem>>, vector<32x128xf32>
    %cst_134 = arith.constant dense<0.000000e+00> : vector<8x128xf32>
    %483 = tpu.matmul %478, %482, %cst_134 {dimension_numbers = #tpu.dot_dimension_numbers<[1], [0], [0], [1], [0, 0, 1, 1], [], []>} : vector<8x32xf32>, vector<32x128xf32>, vector<8x128xf32> -> vector<8x128xf32>
    %484 = arith.addf %481, %483 : vector<8x128xf32>
    %485 = arith.addf %484, %484 : vector<8x128xf32>
    %486 = arith.select %8, %485, %484 : vector<8x128xi1>, vector<8x128xf32>
    %487 = arith.negf %486 : vector<8x128xf32>
    %488 = math.exp %487 : vector<8x128xf32>
    %cst_135 = arith.constant 1.000000e+00 : f32
    %489 = vector.broadcast %cst_135 : f32 to vector<8x128xf32>
    %490 = arith.addf %489, %488 : vector<8x128xf32>
    %491 = arith.divf %489, %490 : vector<8x128xf32>
    %492 = arith.addf %491, %491 : vector<8x128xf32>
    %cst_136 = arith.constant 1.000000e+00 : f32
    %493 = vector.broadcast %cst_136 : f32 to vector<8x128xf32>
    %494 = arith.subf %492, %493 : vector<8x128xf32>
    %495 = arith.select %8, %494, %491 : vector<8x128xi1>, vector<8x128xf32>
    %496 = vector.extract_strided_slice %495 {offsets = [0, 0], sizes = [8, 32], strides = [1, 1]} : vector<8x128xf32> to vector<8x32xf32>
    %497 = vector.extract_strided_slice %495 {offsets = [0, 32], sizes = [8, 32], strides = [1, 1]} : vector<8x128xf32> to vector<8x32xf32>
    %498 = vector.extract_strided_slice %495 {offsets = [0, 64], sizes = [8, 32], strides = [1, 1]} : vector<8x128xf32> to vector<8x32xf32>
    %499 = vector.extract_strided_slice %495 {offsets = [0, 96], sizes = [8, 32], strides = [1, 1]} : vector<8x128xf32> to vector<8x32xf32>
    %500 = arith.mulf %497, %476 : vector<8x32xf32>
    %501 = arith.mulf %496, %498 : vector<8x32xf32>
    %502 = arith.addf %500, %501 : vector<8x32xf32>
    %503 = math.tanh %502 : vector<8x32xf32>
    %504 = arith.mulf %499, %503 : vector<8x32xf32>
    %c19_i32 = arith.constant 19 : i32
    %505 = arith.index_cast %c19_i32 : i32 to index
    %c0_137 = arith.constant 0 : index
    %c0_138 = arith.constant 0 : index
    %506 = vector.load %arg2[%505, %c0_137, %c0_138] : memref<20x8x128xf32, #tpu.memory_space<vmem>>, vector<1x8x128xf32>
    %507 = vector.shape_cast %506 : vector<1x8x128xf32> to vector<8x128xf32>
    %c0_139 = arith.constant 0 : index
    %c0_140 = arith.constant 0 : index
    %508 = vector.load %arg3[%c0_139, %c0_140] : memref<32x128xf32, #tpu.memory_space<vmem>>, vector<32x128xf32>
    %cst_141 = arith.constant dense<0.000000e+00> : vector<8x128xf32>
    %509 = tpu.matmul %504, %508, %cst_141 {dimension_numbers = #tpu.dot_dimension_numbers<[1], [0], [0], [1], [0, 0, 1, 1], [], []>} : vector<8x32xf32>, vector<32x128xf32>, vector<8x128xf32> -> vector<8x128xf32>
    %510 = arith.addf %507, %509 : vector<8x128xf32>
    %511 = arith.addf %510, %510 : vector<8x128xf32>
    %512 = arith.select %8, %511, %510 : vector<8x128xi1>, vector<8x128xf32>
    %513 = arith.negf %512 : vector<8x128xf32>
    %514 = math.exp %513 : vector<8x128xf32>
    %cst_142 = arith.constant 1.000000e+00 : f32
    %515 = vector.broadcast %cst_142 : f32 to vector<8x128xf32>
    %516 = arith.addf %515, %514 : vector<8x128xf32>
    %517 = arith.divf %515, %516 : vector<8x128xf32>
    %518 = arith.addf %517, %517 : vector<8x128xf32>
    %cst_143 = arith.constant 1.000000e+00 : f32
    %519 = vector.broadcast %cst_143 : f32 to vector<8x128xf32>
    %520 = arith.subf %518, %519 : vector<8x128xf32>
    %521 = arith.select %8, %520, %517 : vector<8x128xi1>, vector<8x128xf32>
    %522 = vector.extract_strided_slice %521 {offsets = [0, 0], sizes = [8, 32], strides = [1, 1]} : vector<8x128xf32> to vector<8x32xf32>
    %523 = vector.extract_strided_slice %521 {offsets = [0, 32], sizes = [8, 32], strides = [1, 1]} : vector<8x128xf32> to vector<8x32xf32>
    %524 = vector.extract_strided_slice %521 {offsets = [0, 64], sizes = [8, 32], strides = [1, 1]} : vector<8x128xf32> to vector<8x32xf32>
    %525 = vector.extract_strided_slice %521 {offsets = [0, 96], sizes = [8, 32], strides = [1, 1]} : vector<8x128xf32> to vector<8x32xf32>
    %526 = arith.mulf %523, %502 : vector<8x32xf32>
    %527 = arith.mulf %522, %524 : vector<8x32xf32>
    %528 = arith.addf %526, %527 : vector<8x32xf32>
    %529 = math.tanh %528 : vector<8x32xf32>
    %530 = arith.mulf %525, %529 : vector<8x32xf32>
    %c20_i32 = arith.constant 20 : i32
    %c0_144 = arith.constant 0 : index
    %c0_145 = arith.constant 0 : index
    %531 = vector.load %arg7[%c0_144, %c0_145] : memref<8x32xf32, #tpu.memory_space<vmem>>, vector<8x32xf32>
    tpu.vector_store %arg7[%c0_144, %c0_145], %530 {strides = array<i32>} : memref<8x32xf32, #tpu.memory_space<vmem>>, vector<8x32xf32>,
    %c0_146 = arith.constant 0 : index
    %c0_147 = arith.constant 0 : index
    %532 = vector.load %arg8[%c0_146, %c0_147] : memref<8x32xf32, #tpu.memory_space<vmem>>, vector<8x32xf32>
    tpu.vector_store %arg8[%c0_146, %c0_147], %528 {strides = array<i32>} : memref<8x32xf32, #tpu.memory_space<vmem>>, vector<8x32xf32>,
    %c0_i32_148 = arith.constant 0 : i32
    %533 = arith.cmpi eq, %arg1, %c0_i32_148 : i32
    %534 = arith.extui %533 : i1 to i32
    %c0_i32_149 = arith.constant 0 : i32
    %535 = arith.cmpi ne, %534, %c0_i32_149 : i32
    scf.if %535 {
      %c0_150 = arith.constant 0 : index
      %c0_151 = arith.constant 0 : index
      %536 = vector.load %arg4[%c0_150, %c0_151] : memref<32x128xf32, #tpu.memory_space<vmem>>, vector<32x128xf32>
      %cst_152 = arith.constant dense<0.000000e+00> : vector<8x128xf32>
      %537 = tpu.matmul %530, %536, %cst_152 {dimension_numbers = #tpu.dot_dimension_numbers<[1], [0], [0], [1], [0, 0, 1, 1], [], []>} : vector<8x32xf32>, vector<32x128xf32>, vector<8x128xf32> -> vector<8x128xf32>
      %c0_153 = arith.constant 0 : index
      %c0_154 = arith.constant 0 : index
      %538 = vector.load %arg5[%c0_153, %c0_154] : memref<1x128xf32, #tpu.memory_space<vmem>>, vector<1x128xf32>
      %539 = vector.broadcast %538 : vector<1x128xf32> to vector<8x128xf32>
      %540 = arith.addf %537, %539 : vector<8x128xf32>
      %c0_155 = arith.constant 0 : index
      %c0_156 = arith.constant 0 : index
      %541 = vector.load %arg6[%c0_155, %c0_156] : memref<8x128xf32, #tpu.memory_space<vmem>>, vector<8x128xf32>
      tpu.vector_store %arg6[%c0_155, %c0_156], %540 {strides = array<i32>} : memref<8x128xf32, #tpu.memory_space<vmem>>, vector<8x128xf32>,
    } else {
    }
    return
  }
  func.func @transform_0(%arg0: i32, %arg1: i32) -> (i32, i32, i32) {
    %c0_i32 = arith.constant 0 : i32
    %c0_i32_0 = arith.constant 0 : i32
    return %arg1, %arg0, %c0_i32 : i32, i32, i32
  }
  func.func @transform_1(%arg0: i32, %arg1: i32) -> (i32, i32) {
    %c0_i32 = arith.constant 0 : i32
    %c0_i32_0 = arith.constant 0 : i32
    %c0_i32_1 = arith.constant 0 : i32
    return %c0_i32, %c0_i32_0 : i32, i32
  }
  func.func @transform_2(%arg0: i32, %arg1: i32) -> (i32, i32) {
    %c0_i32 = arith.constant 0 : i32
    %c0_i32_0 = arith.constant 0 : i32
    %c0_i32_1 = arith.constant 0 : i32
    return %c0_i32, %c0_i32_0 : i32, i32
  }
  func.func @transform_3(%arg0: i32, %arg1: i32) -> (i32, i32) {
    %c0_i32 = arith.constant 0 : i32
    %c0_i32_0 = arith.constant 0 : i32
    %c0_i32_1 = arith.constant 0 : i32
    return %c0_i32, %c0_i32_0 : i32, i32
  }
  func.func @transform_4(%arg0: i32, %arg1: i32) -> (i32, i32) {
    %c0_i32 = arith.constant 0 : i32
    %c0_i32_0 = arith.constant 0 : i32
    return %arg0, %c0_i32 : i32, i32
  }
}

</mosaic_0001>

<llo_original>
// kernel: rnn_classifier_forward.1
$region0: #{rnn_classifier_forward.1}
  #allocation0 [shape = 'u32[]', space=smem, size = 0x4, offset = 0x4, fixed_abs, tag = 'smem constant byte address 0x4 - core index']
  #allocation1 [shape = 'u32[72,128]{1,0:T(1,128)}', space=vmem, size = 0x9000, scoped, tag = 'internal scratch']
  #allocation2 [shape = 'f32[8,32]{1,0:T(8,128)}', space=vmem, size = 0x1000, scoped, tag = 'scratch operand']
  #allocation3 [shape = 'f32[8,32]{1,0:T(8,128)}', space=vmem, size = 0x1000, scoped, tag = 'scratch operand']
  %s0 = inlined_call_operand.vmem [shape: f32[20,8,128], index: 0, kind: input, shape index: {}]
  %s1 = inlined_call_operand.vmem [shape: f32[32,128], index: 1, kind: input, shape index: {}]
  %s2 = inlined_call_operand.vmem [shape: f32[32,128], index: 2, kind: input, shape index: {}]
  %s3 = inlined_call_operand.vmem [shape: f32[1,128], index: 3, kind: input, shape index: {}]
  %s4 = inlined_call_operand.vmem [shape: f32[8,128], index: 4, kind: output, shape index: {}]
  %s5 = sld [smem:[#allocation0]]
  $region34: #{rnn_classifier_forward.1} parent=0
    _
  %s7 = ssub.s32 1, %s5
  %s8 = scalar_select 0, %s7, %s5
  // Predicated region
  $region2: #{rnn_classifier_forward.1} parent=0 // pred_check
    _
  $region3: #{rnn_classifier_forward.1} parent=0 // pred_check_branch
    %10 = sbr.rel (0) target = $region5
  $region4: #{rnn_classifier_forward.1} parent=0 // pred_region
    _
  $region5: #{rnn_classifier_forward.1} parent=0 // pred_fallthru
    _
  // Predicated region
  $region6: #{rnn_classifier_forward.1} parent=0 // pred_check
    _
  $region7: #{rnn_classifier_forward.1} parent=0 // pred_check_branch
    %12 = sbr.rel (0) target = $region9
  $region8: #{rnn_classifier_forward.1} parent=0 // pred_region
    _
  $region9: #{rnn_classifier_forward.1} parent=0 // pred_fallthru
    _
  // Predicated region
  $region10: #{rnn_classifier_forward.1} parent=0 // pred_check
    _
  $region11: #{rnn_classifier_forward.1} parent=0 // pred_check_branch
    %14 = sbr.rel (0) target = $region13
  $region12: #{rnn_classifier_forward.1} parent=0 // pred_region
    _
  $region13: #{rnn_classifier_forward.1} parent=0 // pred_fallthru
    _
  // Predicated region
  $region14: #{rnn_classifier_forward.1} parent=0 // pred_check
    _
  $region15: #{rnn_classifier_forward.1} parent=0 // pred_check_branch
    %16 = sbr.rel (0) target = $region17
  $region16: #{rnn_classifier_forward.1} parent=0 // pred_region
    _
  $region17: #{rnn_classifier_forward.1} parent=0 // pred_fallthru
    _
  %p17 = scmp.eq.s32.totalorder 0, 0
  // Predicated region
  $region18: #{rnn_classifier_forward.1} parent=0 // pred_check
    %p18 = pneg %p17
  $region19: #{rnn_classifier_forward.1} parent=0 // pred_check_branch
    %20 = sbr.rel (%p18) target = $region21
  $region20: #{rnn_classifier_forward.1} parent=0 // pred_region
    %vm21 = vcmask 261120
    %22 = vst.msk [vmem:[#allocation2] sm:$0xff] %vm21, 0.0
    %23 = vst.msk [vmem:[#allocation3] sm:$0xff] %vm21, 0.0
  $region21: #{rnn_classifier_forward.1} parent=0 // pred_fallthru
    _
  %v24 = vlaneseq
  %v25 = vand.u32 %v24, 127
  %vm26 = vcmp.ge.s32.totalorder %v25, 64
  %vm27 = vcmp.lt.s32.totalorder %v25, 96
  %vm28 = vmand %vm26, %vm27
  %v29 = vld [vmem:[#allocation2] sm:$0xff]
  %v30 = vld [vmem:[#allocation3] sm:$0xff]
  %v31 = vld [vmem:[%s0] sm:$0xff]
  %v32 = vld [vmem:[%s1] sm:$0xff]
  %v33 = vld [vmem:[%s1 + $0x8] sm:$0xff]
  %v34 = vld [vmem:[%s1 + $0x10] sm:$0xff]
  %v35 = vld [vmem:[%s1 + $0x18] sm:$0xff]
  %vm36 = vcmask 261120
  %v38 = vsel %vm36, %v29, 0
  %40 = vmatpush.msra.mxu0 0.0
  %41 = vmatpush.msra.mxu0 0.0
  %42 = vmatpush.msra.mxu0 0.0
  %43 = vmatpush.msra.mxu0 0.0
  %44 = vmatpush.msra.mxu0 0.0
  %45 = vmatpush.msra.mxu0 0.0
  %46 = vmatpush.msra.mxu0 0.0
  %47 = vmatpush.msra.mxu0 0.0
  %48 = vmatpush.msra.mxu0 0.0
  %49 = vmatpush.msra.mxu0 0.0
  %50 = vmatpush.msra.mxu0 0.0
  %51 = vmatpush.msra.mxu0 0.0
  %52 = vmatpush.msra.mxu0 %v35
  %53 = vmatpush.msra.mxu0 %v34
  %54 = vmatpush.msra.mxu0 %v33
  %55 = vmatpush.msra.mxu0 %v32
  %56 = vmatmul.f32.gmra.mxu0 %v38
  %v57 = vpop.f32.mrf.mxu0
  %v58 = vadd.f32 0.0, %v57
  %59 = vdwg.mxu0
  %v60 = vadd.f32 %v31, %v58
  %v61 = vadd.f32 %v60, %v60
  %v62 = vsel %vm28, %v61, %v60
  %v63 = vxor.u32 %v62, 2147483648
  %v64 = vmul.f32 %v63, 1.442695
  %v65 = vpow.pop %v64
  %v66 = vadd.f32 %v65, 1.0
  %v67 = vrcp.pop %v66
  %v68 = vmul.f32 %v66, %v67
  %v69 = vsub.f32 1.0, %v68
  %v70 = vmul.f32 %v67, %v69
  %v71 = vadd.f32 %v67, %v70
  %vm72 = vweird.f32 %v66
  %vm73 = vweird.f32 %v67
  %vm74 = vmor %vm72, %vm73
  %v75 = vsel %vm74, %v67, %v71
  %v76 = vand.u32 2147483647, %v66
  %vm77 = vcmp.eq.f32.partialorder %v76, 8.507059e+37
  %v78 = vand.u32 %v66, 2147483648
  %v79 = vor.u32 1.1754944e-38, %v78
  %v80 = vsel %vm77, %v79, %v75
  %v81 = vmul.f32 1.0, %v80
  %v82 = vadd.f32 %v81, %v81
  %v83 = vsub.f32 %v82, 1.0
  %v84 = vsel %vm28, %v83, %v81
  %86 = vrot.lane.b32.xlu0 %v30, 32
  %v87 = vpop.permute.xlu0 %86
  %v89 = vmul.f32 %v84, %v87
  %91 = vrot.lane.b32.xlu0 %v84, 64
  %v92 = vpop.permute.xlu0 %91
  %v94 = vmul.f32 %v84, %v92
  %96 = vrot.lane.b32.xlu0 %v94, 32
  %v97 = vpop.permute.xlu0 %96
  %v99 = vadd.f32 %v89, %v97
  %v100 = vtanh.pop %v99
  %102 = vrot.lane.b32.xlu0 %v100, 64
  %v103 = vpop.permute.xlu0 %102
  %v105 = vmul.f32 %v84, %v103
  %s106 = scalar_lea.vmem %s0, 8
  %v107 = vld [vmem:[%s106] sm:$0xff]
  %109 = vrot.lane.b32.xlu0 %v105, 32
  %v110 = vpop.permute.xlu0 %109
  %v111 = vsel %vm36, %v110, 0
  %113 = vmatpush.msra.mxu0 0.0
  %114 = vmatpush.msra.mxu0 0.0
  %115 = vmatpush.msra.mxu0 0.0
  %116 = vmatpush.msra.mxu0 0.0
  %117 = vmatpush.msra.mxu0 0.0
  %118 = vmatpush.msra.mxu0 0.0
  %119 = vmatpush.msra.mxu0 0.0
  %120 = vmatpush.msra.mxu0 0.0
  %121 = vmatpush.msra.mxu0 0.0
  %122 = vmatpush.msra.mxu0 0.0
  %123 = vmatpush.msra.mxu0 0.0
  %124 = vmatpush.msra.mxu0 0.0
  %125 = vmatpush.msra.mxu0 %v35
  %126 = vmatpush.msra.mxu0 %v34
  %127 = vmatpush.msra.mxu0 %v33
  %128 = vmatpush.msra.mxu0 %v32
  %129 = vmatmul.f32.gmra.mxu0 %v111
  %v130 = vpop.f32.mrf.mxu0
  %v131 = vadd.f32 0.0, %v130
  %132 = vdwg.mxu0
  %v133 = vadd.f32 %v107, %v131
  %v134 = vadd.f32 %v133, %v133
  %v135 = vsel %vm28, %v134, %v133
  %v136 = vxor.u32 %v135, 2147483648
  %v137 = vmul.f32 %v136, 1.442695
  %v138 = vpow.pop %v137
  %v139 = vadd.f32 %v138, 1.0
  %v140 = vrcp.pop %v139
  %v141 = vmul.f32 %v139, %v140
  %v142 = vsub.f32 1.0, %v141
  %v143 = vmul.f32 %v140, %v142
  %v144 = vadd.f32 %v140, %v143
  %vm145 = vweird.f32 %v139
  %vm146 = vweird.f32 %v140
  %vm147 = vmor %vm145, %vm146
  %v148 = vsel %vm147, %v140, %v144
  %v149 = vand.u32 2147483647, %v139
  %vm150 = vcmp.eq.f32.partialorder %v149, 8.507059e+37
  %v151 = vand.u32 %v139, 2147483648
  %v152 = vor.u32 1.1754944e-38, %v151
  %v153 = vsel %vm150, %v152, %v148
  %v154 = vmul.f32 1.0, %v153
  %v155 = vadd.f32 %v154, %v154
  %v156 = vsub.f32 %v155, 1.0
  %v157 = vsel %vm28, %v156, %v154
  %v158 = vmul.f32 %v157, %v99
  %160 = vrot.lane.b32.xlu0 %v157, 64
  %v161 = vpop.permute.xlu0 %160
  %v163 = vmul.f32 %v157, %v161
  %165 = vrot.lane.b32.xlu0 %v163, 32
  %v166 = vpop.permute.xlu0 %165
  %v168 = vadd.f32 %v158, %v166
  %v169 = vtanh.pop %v168
  %171 = vrot.lane.b32.xlu0 %v169, 64
  %v172 = vpop.permute.xlu0 %171
  %v174 = vmul.f32 %v157, %v172
  %s175 = scalar_lea.vmem %s0, 16
  %v176 = vld [vmem:[%s175] sm:$0xff]
  %178 = vrot.lane.b32.xlu0 %v174, 32
  %v179 = vpop.permute.xlu0 %178
  %v180 = vsel %vm36, %v179, 0
  %182 = vmatpush.msra.mxu0 0.0
  %183 = vmatpush.msra.mxu0 0.0
  %184 = vmatpush.msra.mxu0 0.0
  %185 = vmatpush.msra.mxu0 0.0
  %186 = vmatpush.msra.mxu0 0.0
  %187 = vmatpush.msra.mxu0 0.0
  %188 = vmatpush.msra.mxu0 0.0
  %189 = vmatpush.msra.mxu0 0.0
  %190 = vmatpush.msra.mxu0 0.0
  %191 = vmatpush.msra.mxu0 0.0
  %192 = vmatpush.msra.mxu0 0.0
  %193 = vmatpush.msra.mxu0 0.0
  %194 = vmatpush.msra.mxu0 %v35
  %195 = vmatpush.msra.mxu0 %v34
  %196 = vmatpush.msra.mxu0 %v33
  %197 = vmatpush.msra.mxu0 %v32
  %198 = vmatmul.f32.gmra.mxu0 %v180
  %v199 = vpop.f32.mrf.mxu0
  %v200 = vadd.f32 0.0, %v199
  %201 = vdwg.mxu0
  %v202 = vadd.f32 %v176, %v200
  %v203 = vadd.f32 %v202, %v202
  %v204 = vsel %vm28, %v203, %v202
  %v205 = vxor.u32 %v204, 2147483648
  %v206 = vmul.f32 %v205, 1.442695
  %v207 = vpow.pop %v206
  %v208 = vadd.f32 %v207, 1.0
  %v209 = vrcp.pop %v208
  %v210 = vmul.f32 %v208, %v209
  %v211 = vsub.f32 1.0, %v210
  %v212 = vmul.f32 %v209, %v211
  %v213 = vadd.f32 %v209, %v212
  %vm214 = vweird.f32 %v208
  %vm215 = vweird.f32 %v209
  %vm216 = vmor %vm214, %vm215
  %v217 = vsel %vm216, %v209, %v213
  %v218 = vand.u32 2147483647, %v208
  %vm219 = vcmp.eq.f32.partialorder %v218, 8.507059e+37
  %v220 = vand.u32 %v208, 2147483648
  %v221 = vor.u32 1.1754944e-38, %v220
  %v222 = vsel %vm219, %v221, %v217
  %v223 = vmul.f32 1.0, %v222
  %v224 = vadd.f32 %v223, %v223
  %v225 = vsub.f32 %v224, 1.0
  %v226 = vsel %vm28, %v225, %v223
  %v227 = vmul.f32 %v226, %v168
  %229 = vrot.lane.b32.xlu0 %v226, 64
  %v230 = vpop.permute.xlu0 %229
  %v232 = vmul.f32 %v226, %v230
  %234 = vrot.lane.b32.xlu0 %v232, 32
  %v235 = vpop.permute.xlu0 %234
  %v237 = vadd.f32 %v227, %v235
  %v238 = vtanh.pop %v237
  %240 = vrot.lane.b32.xlu0 %v238, 64
  %v241 = vpop.permute.xlu0 %240
  %v243 = vmul.f32 %v226, %v241
  %s244 = scalar_lea.vmem %s0, 24
  %v245 = vld [vmem:[%s244] sm:$0xff]
  %247 = vrot.lane.b32.xlu0 %v243, 32
  %v248 = vpop.permute.xlu0 %247
  %v249 = vsel %vm36, %v248, 0
  %251 = vmatpush.msra.mxu0 0.0
  %252 = vmatpush.msra.mxu0 0.0
  %253 = vmatpush.msra.mxu0 0.0
  %254 = vmatpush.msra.mxu0 0.0
  %255 = vmatpush.msra.mxu0 0.0
  %256 = vmatpush.msra.mxu0 0.0
  %257 = vmatpush.msra.mxu0 0.0
  %258 = vmatpush.msra.mxu0 0.0
  %259 = vmatpush.msra.mxu0 0.0
  %260 = vmatpush.msra.mxu0 0.0
  %261 = vmatpush.msra.mxu0 0.0
  %262 = vmatpush.msra.mxu0 0.0
  %263 = vmatpush.msra.mxu0 %v35
  %264 = vmatpush.msra.mxu0 %v34
  %265 = vmatpush.msra.mxu0 %v33
  %266 = vmatpush.msra.mxu0 %v32
  %267 = vmatmul.f32.gmra.mxu0 %v249
  %v268 = vpop.f32.mrf.mxu0
  %v269 = vadd.f32 0.0, %v268
  %270 = vdwg.mxu0
  %v271 = vadd.f32 %v245, %v269
  %v272 = vadd.f32 %v271, %v271
  %v273 = vsel %vm28, %v272, %v271
  %v274 = vxor.u32 %v273, 2147483648
  %v275 = vmul.f32 %v274, 1.442695
  %v276 = vpow.pop %v275
  %v277 = vadd.f32 %v276, 1.0
  %v278 = vrcp.pop %v277
  %v279 = vmul.f32 %v277, %v278
  %v280 = vsub.f32 1.0, %v279
  %v281 = vmul.f32 %v278, %v280
  %v282 = vadd.f32 %v278, %v281
  %vm283 = vweird.f32 %v277
  %vm284 = vweird.f32 %v278
  %vm285 = vmor %vm283, %vm284
  %v286 = vsel %vm285, %v278, %v282
  %v287 = vand.u32 2147483647, %v277
  %vm288 = vcmp.eq.f32.partialorder %v287, 8.507059e+37
  %v289 = vand.u32 %v277, 2147483648
  %v290 = vor.u32 1.1754944e-38, %v289
  %v291 = vsel %vm288, %v290, %v286
  %v292 = vmul.f32 1.0, %v291
  %v293 = vadd.f32 %v292, %v292
  %v294 = vsub.f32 %v293, 1.0
  %v295 = vsel %vm28, %v294, %v292
  %v296 = vmul.f32 %v295, %v237
  %298 = vrot.lane.b32.xlu0 %v295, 64
  %v299 = vpop.permute.xlu0 %298
  %v301 = vmul.f32 %v295, %v299
  %303 = vrot.lane.b32.xlu0 %v301, 32
  %v304 = vpop.permute.xlu0 %303
  %v306 = vadd.f32 %v296, %v304
  %v307 = vtanh.pop %v306
  %309 = vrot.lane.b32.xlu0 %v307, 64
  %v310 = vpop.permute.xlu0 %309
  %v312 = vmul.f32 %v295, %v310
  %s313 = scalar_lea.vmem %s0, 32
  %v314 = vld [vmem:[%s313] sm:$0xff]
  %316 = vrot.lane.b32.xlu0 %v312, 32
  %v317 = vpop.permute.xlu0 %316
  %v318 = vsel %vm36, %v317, 0
  %320 = vmatpush.msra.mxu0 0.0
  %321 = vmatpush.msra.mxu0 0.0
  %322 = vmatpush.msra.mxu0 0.0
  %323 = vmatpush.msra.mxu0 0.0
  %324 = vmatpush.msra.mxu0 0.0
  %325 = vmatpush.msra.mxu0 0.0
  %326 = vmatpush.msra.mxu0 0.0
  %327 = vmatpush.msra.mxu0 0.0
  %328 = vmatpush.msra.mxu0 0.0
  %329 = vmatpush.msra.mxu0 0.0
  %330 = vmatpush.msra.mxu0 0.0
  %331 = vmatpush.msra.mxu0 0.0
  %332 = vmatpush.msra.mxu0 %v35
  %333 = vmatpush.msra.mxu0 %v34
  %334 = vmatpush.msra.mxu0 %v33
  %335 = vmatpush.msra.mxu0 %v32
  %336 = vmatmul.f32.gmra.mxu0 %v318
  %v337 = vpop.f32.mrf.mxu0
  %v338 = vadd.f32 0.0, %v337
  %339 = vdwg.mxu0
  %v340 = vadd.f32 %v314, %v338
  %v341 = vadd.f32 %v340, %v340
  %v342 = vsel %vm28, %v341, %v340
  %v343 = vxor.u32 %v342, 2147483648
  %v344 = vmul.f32 %v343, 1.442695
  %v345 = vpow.pop %v344
  %v346 = vadd.f32 %v345, 1.0
  %v347 = vrcp.pop %v346
  %v348 = vmul.f32 %v346, %v347
  %v349 = vsub.f32 1.0, %v348
  %v350 = vmul.f32 %v347, %v349
  %v351 = vadd.f32 %v347, %v350
  %vm352 = vweird.f32 %v346
  %vm353 = vweird.f32 %v347
  %vm354 = vmor %vm352, %vm353
  %v355 = vsel %vm354, %v347, %v351
  %v356 = vand.u32 2147483647, %v346
  %vm357 = vcmp.eq.f32.partialorder %v356, 8.507059e+37
  %v358 = vand.u32 %v346, 2147483648
  %v359 = vor.u32 1.1754944e-38, %v358
  %v360 = vsel %vm357, %v359, %v355
  %v361 = vmul.f32 1.0, %v360
  %v362 = vadd.f32 %v361, %v361
  %v363 = vsub.f32 %v362, 1.0
  %v364 = vsel %vm28, %v363, %v361
  %v365 = vmul.f32 %v364, %v306
  %367 = vrot.lane.b32.xlu0 %v364, 64
  %v368 = vpop.permute.xlu0 %367
  %v370 = vmul.f32 %v364, %v368
  %372 = vrot.lane.b32.xlu0 %v370, 32
  %v373 = vpop.permute.xlu0 %372
  %v375 = vadd.f32 %v365, %v373
  %v376 = vtanh.pop %v375
  %378 = vrot.lane.b32.xlu0 %v376, 64
  %v379 = vpop.permute.xlu0 %378
  %v381 = vmul.f32 %v364, %v379
  %s382 = scalar_lea.vmem %s0, 40
  %v383 = vld [vmem:[%s382] sm:$0xff]
  %385 = vrot.lane.b32.xlu0 %v381, 32
  %v386 = vpop.permute.xlu0 %385
  %v387 = vsel %vm36, %v386, 0
  %389 = vmatpush.msra.mxu0 0.0
  %390 = vmatpush.msra.mxu0 0.0
  %391 = vmatpush.msra.mxu0 0.0
  %392 = vmatpush.msra.mxu0 0.0
  %393 = vmatpush.msra.mxu0 0.0
  %394 = vmatpush.msra.mxu0 0.0
  %395 = vmatpush.msra.mxu0 0.0
  %396 = vmatpush.msra.mxu0 0.0
  %397 = vmatpush.msra.mxu0 0.0
  %398 = vmatpush.msra.mxu0 0.0
  %399 = vmatpush.msra.mxu0 0.0
  %400 = vmatpush.msra.mxu0 0.0
  %401 = vmatpush.msra.mxu0 %v35
  %402 = vmatpush.msra.mxu0 %v34
  %403 = vmatpush.msra.mxu0 %v33
  %404 = vmatpush.msra.mxu0 %v32
  %405 = vmatmul.f32.gmra.mxu0 %v387
  %v406 = vpop.f32.mrf.mxu0
  %v407 = vadd.f32 0.0, %v406
  %408 = vdwg.mxu0
  %v409 = vadd.f32 %v383, %v407
  %v410 = vadd.f32 %v409, %v409
  %v411 = vsel %vm28, %v410, %v409
  %v412 = vxor.u32 %v411, 2147483648
  %v413 = vmul.f32 %v412, 1.442695
  %v414 = vpow.pop %v413
  %v415 = vadd.f32 %v414, 1.0
  %v416 = vrcp.pop %v415
  %v417 = vmul.f32 %v415, %v416
  %v418 = vsub.f32 1.0, %v417
  %v419 = vmul.f32 %v416, %v418
  %v420 = vadd.f32 %v416, %v419
  %vm421 = vweird.f32 %v415
  %vm422 = vweird.f32 %v416
  %vm423 = vmor %vm421, %vm422
  %v424 = vsel %vm423, %v416, %v420
  %v425 = vand.u32 2147483647, %v415
  %vm426 = vcmp.eq.f32.partialorder %v425, 8.507059e+37
  %v427 = vand.u32 %v415, 2147483648
  %v428 = vor.u32 1.1754944e-38, %v427
  %v429 = vsel %vm426, %v428, %v424
  %v430 = vmul.f32 1.0, %v429
  %v431 = vadd.f32 %v430, %v430
  %v432 = vsub.f32 %v431, 1.0
  %v433 = vsel %vm28, %v432, %v430
  %v434 = vmul.f32 %v433, %v375
  %436 = vrot.lane.b32.xlu0 %v433, 64
  %v437 = vpop.permute.xlu0 %436
  %v439 = vmul.f32 %v433, %v437
  %441 = vrot.lane.b32.xlu0 %v439, 32
  %v442 = vpop.permute.xlu0 %441
  %v444 = vadd.f32 %v434, %v442
  %v445 = vtanh.pop %v444
  %447 = vrot.lane.b32.xlu0 %v445, 64
  %v448 = vpop.permute.xlu0 %447
  %v450 = vmul.f32 %v433, %v448
  %s451 = scalar_lea.vmem %s0, 48
  %v452 = vld [vmem:[%s451] sm:$0xff]
  %454 = vrot.lane.b32.xlu0 %v450, 32
  %v455 = vpop.permute.xlu0 %454
  %v456 = vsel %vm36, %v455, 0
  %458 = vmatpush.msra.mxu0 0.0
  %459 = vmatpush.msra.mxu0 0.0
  %460 = vmatpush.msra.mxu0 0.0
  %461 = vmatpush.msra.mxu0 0.0
  %462 = vmatpush.msra.mxu0 0.0
  %463 = vmatpush.msra.mxu0 0.0
  %464 = vmatpush.msra.mxu0 0.0
  %465 = vmatpush.msra.mxu0 0.0
  %466 = vmatpush.msra.mxu0 0.0
  %467 = vmatpush.msra.mxu0 0.0
  %468 = vmatpush.msra.mxu0 0.0
  %469 = vmatpush.msra.mxu0 0.0
  %470 = vmatpush.msra.mxu0 %v35
  %471 = vmatpush.msra.mxu0 %v34
  %472 = vmatpush.msra.mxu0 %v33
  %473 = vmatpush.msra.mxu0 %v32
  %474 = vmatmul.f32.gmra.mxu0 %v456
  %v475 = vpop.f32.mrf.mxu0
  %v476 = vadd.f32 0.0, %v475
  %477 = vdwg.mxu0
  %v478 = vadd.f32 %v452, %v476
  %v479 = vadd.f32 %v478, %v478
  %v480 = vsel %vm28, %v479, %v478
  %v481 = vxor.u32 %v480, 2147483648
  %v482 = vmul.f32 %v481, 1.442695
  %v483 = vpow.pop %v482
  %v484 = vadd.f32 %v483, 1.0
  %v485 = vrcp.pop %v484
  %v486 = vmul.f32 %v484, %v485
  %v487 = vsub.f32 1.0, %v486
  %v488 = vmul.f32 %v485, %v487
  %v489 = vadd.f32 %v485, %v488
  %vm490 = vweird.f32 %v484
  %vm491 = vweird.f32 %v485
  %vm492 = vmor %vm490, %vm491
  %v493 = vsel %vm492, %v485, %v489
  %v494 = vand.u32 2147483647, %v484
  %vm495 = vcmp.eq.f32.partialorder %v494, 8.507059e+37
  %v496 = vand.u32 %v484, 2147483648
  %v497 = vor.u32 1.1754944e-38, %v496
  %v498 = vsel %vm495, %v497, %v493
  %v499 = vmul.f32 1.0, %v498
  %v500 = vadd.f32 %v499, %v499
  %v501 = vsub.f32 %v500, 1.0
  %v502 = vsel %vm28, %v501, %v499
  %v503 = vmul.f32 %v502, %v444
  %505 = vrot.lane.b32.xlu0 %v502, 64
  %v506 = vpop.permute.xlu0 %505
  %v508 = vmul.f32 %v502, %v506
  %510 = vrot.lane.b32.xlu0 %v508, 32
  %v511 = vpop.permute.xlu0 %510
  %v513 = vadd.f32 %v503, %v511
  %v514 = vtanh.pop %v513
  %516 = vrot.lane.b32.xlu0 %v514, 64
  %v517 = vpop.permute.xlu0 %516
  %v519 = vmul.f32 %v502, %v517
  %s520 = scalar_lea.vmem %s0, 56
  %v521 = vld [vmem:[%s520] sm:$0xff]
  %523 = vrot.lane.b32.xlu0 %v519, 32
  %v524 = vpop.permute.xlu0 %523
  %v525 = vsel %vm36, %v524, 0
  %527 = vmatpush.msra.mxu0 0.0
  %528 = vmatpush.msra.mxu0 0.0
  %529 = vmatpush.msra.mxu0 0.0
  %530 = vmatpush.msra.mxu0 0.0
  %531 = vmatpush.msra.mxu0 0.0
  %532 = vmatpush.msra.mxu0 0.0
  %533 = vmatpush.msra.mxu0 0.0
  %534 = vmatpush.msra.mxu0 0.0
  %535 = vmatpush.msra.mxu0 0.0
  %536 = vmatpush.msra.mxu0 0.0
  %537 = vmatpush.msra.mxu0 0.0
  %538 = vmatpush.msra.mxu0 0.0
  %539 = vmatpush.msra.mxu0 %v35
  %540 = vmatpush.msra.mxu0 %v34
  %541 = vmatpush.msra.mxu0 %v33
  %542 = vmatpush.msra.mxu0 %v32
  %543 = vmatmul.f32.gmra.mxu0 %v525
  %v544 = vpop.f32.mrf.mxu0
  %v545 = vadd.f32 0.0, %v544
  %546 = vdwg.mxu0
  %v547 = vadd.f32 %v521, %v545
  %v548 = vadd.f32 %v547, %v547
  %v549 = vsel %vm28, %v548, %v547
  %v550 = vxor.u32 %v549, 2147483648
  %v551 = vmul.f32 %v550, 1.442695
  %v552 = vpow.pop %v551
  %v553 = vadd.f32 %v552, 1.0
  %v554 = vrcp.pop %v553
  %v555 = vmul.f32 %v553, %v554
  %v556 = vsub.f32 1.0, %v555
  %v557 = vmul.f32 %v554, %v556
  %v558 = vadd.f32 %v554, %v557
  %vm559 = vweird.f32 %v553
  %vm560 = vweird.f32 %v554
  %vm561 = vmor %vm559, %vm560
  %v562 = vsel %vm561, %v554, %v558
  %v563 = vand.u32 2147483647, %v553
  %vm564 = vcmp.eq.f32.partialorder %v563, 8.507059e+37
  %v565 = vand.u32 %v553, 2147483648
  %v566 = vor.u32 1.1754944e-38, %v565
  %v567 = vsel %vm564, %v566, %v562
  %v568 = vmul.f32 1.0, %v567
  %v569 = vadd.f32 %v568, %v568
  %v570 = vsub.f32 %v569, 1.0
  %v571 = vsel %vm28, %v570, %v568
  %v572 = vmul.f32 %v571, %v513
  %574 = vrot.lane.b32.xlu0 %v571, 64
  %v575 = vpop.permute.xlu0 %574
  %v577 = vmul.f32 %v571, %v575
  %579 = vrot.lane.b32.xlu0 %v577, 32
  %v580 = vpop.permute.xlu0 %579
  %v582 = vadd.f32 %v572, %v580
  %v583 = vtanh.pop %v582
  %585 = vrot.lane.b32.xlu0 %v583, 64
  %v586 = vpop.permute.xlu0 %585
  %v588 = vmul.f32 %v571, %v586
  %s589 = scalar_lea.vmem %s0, 64
  %v590 = vld [vmem:[%s589] sm:$0xff]
  %592 = vrot.lane.b32.xlu0 %v588, 32
  %v593 = vpop.permute.xlu0 %592
  %v594 = vsel %vm36, %v593, 0
  %596 = vmatpush.msra.mxu0 0.0
  %597 = vmatpush.msra.mxu0 0.0
  %598 = vmatpush.msra.mxu0 0.0
  %599 = vmatpush.msra.mxu0 0.0
  %600 = vmatpush.msra.mxu0 0.0
  %601 = vmatpush.msra.mxu0 0.0
  %602 = vmatpush.msra.mxu0 0.0
  %603 = vmatpush.msra.mxu0 0.0
  %604 = vmatpush.msra.mxu0 0.0
  %605 = vmatpush.msra.mxu0 0.0
  %606 = vmatpush.msra.mxu0 0.0
  %607 = vmatpush.msra.mxu0 0.0
  %608 = vmatpush.msra.mxu0 %v35
  %609 = vmatpush.msra.mxu0 %v34
  %610 = vmatpush.msra.mxu0 %v33
  %611 = vmatpush.msra.mxu0 %v32
  %612 = vmatmul.f32.gmra.mxu0 %v594
  %v613 = vpop.f32.mrf.mxu0
  %v614 = vadd.f32 0.0, %v613
  %615 = vdwg.mxu0
  %v616 = vadd.f32 %v590, %v614
  %v617 = vadd.f32 %v616, %v616
  %v618 = vsel %vm28, %v617, %v616
  %v619 = vxor.u32 %v618, 2147483648
  %v620 = vmul.f32 %v619, 1.442695
  %v621 = vpow.pop %v620
  %v622 = vadd.f32 %v621, 1.0
  %v623 = vrcp.pop %v622
  %v624 = vmul.f32 %v622, %v623
  %v625 = vsub.f32 1.0, %v624
  %v626 = vmul.f32 %v623, %v625
  %v627 = vadd.f32 %v623, %v626
  %vm628 = vweird.f32 %v622
  %vm629 = vweird.f32 %v623
  %vm630 = vmor %vm628, %vm629
  %v631 = vsel %vm630, %v623, %v627
  %v632 = vand.u32 2147483647, %v622
  %vm633 = vcmp.eq.f32.partialorder %v632, 8.507059e+37
  %v634 = vand.u32 %v622, 2147483648
  %v635 = vor.u32 1.1754944e-38, %v634
  %v636 = vsel %vm633, %v635, %v631
  %v637 = vmul.f32 1.0, %v636
  %v638 = vadd.f32 %v637, %v637
  %v639 = vsub.f32 %v638, 1.0
  %v640 = vsel %vm28, %v639, %v637
  %v641 = vmul.f32 %v640, %v582
  %643 = vrot.lane.b32.xlu0 %v640, 64
  %v644 = vpop.permute.xlu0 %643
  %v646 = vmul.f32 %v640, %v644
  %648 = vrot.lane.b32.xlu0 %v646, 32
  %v649 = vpop.permute.xlu0 %648
  %v651 = vadd.f32 %v641, %v649
  %v652 = vtanh.pop %v651
  %654 = vrot.lane.b32.xlu0 %v652, 64
  %v655 = vpop.permute.xlu0 %654
  %v657 = vmul.f32 %v640, %v655
  %s658 = scalar_lea.vmem %s0, 72
  %v659 = vld [vmem:[%s658] sm:$0xff]
  %661 = vrot.lane.b32.xlu0 %v657, 32
  %v662 = vpop.permute.xlu0 %661
  %v663 = vsel %vm36, %v662, 0
  %665 = vmatpush.msra.mxu0 0.0
  %666 = vmatpush.msra.mxu0 0.0
  %667 = vmatpush.msra.mxu0 0.0
  %668 = vmatpush.msra.mxu0 0.0
  %669 = vmatpush.msra.mxu0 0.0
  %670 = vmatpush.msra.mxu0 0.0
  %671 = vmatpush.msra.mxu0 0.0
  %672 = vmatpush.msra.mxu0 0.0
  %673 = vmatpush.msra.mxu0 0.0
  %674 = vmatpush.msra.mxu0 0.0
  %675 = vmatpush.msra.mxu0 0.0
  %676 = vmatpush.msra.mxu0 0.0
  %677 = vmatpush.msra.mxu0 %v35
  %678 = vmatpush.msra.mxu0 %v34
  %679 = vmatpush.msra.mxu0 %v33
  %680 = vmatpush.msra.mxu0 %v32
  %681 = vmatmul.f32.gmra.mxu0 %v663
  %v682 = vpop.f32.mrf.mxu0
  %v683 = vadd.f32 0.0, %v682
  %684 = vdwg.mxu0
  %v685 = vadd.f32 %v659, %v683
  %v686 = vadd.f32 %v685, %v685
  %v687 = vsel %vm28, %v686, %v685
  %v688 = vxor.u32 %v687, 2147483648
  %v689 = vmul.f32 %v688, 1.442695
  %v690 = vpow.pop %v689
  %v691 = vadd.f32 %v690, 1.0
  %v692 = vrcp.pop %v691
  %v693 = vmul.f32 %v691, %v692
  %v694 = vsub.f32 1.0, %v693
  %v695 = vmul.f32 %v692, %v694
  %v696 = vadd.f32 %v692, %v695
  %vm697 = vweird.f32 %v691
  %vm698 = vweird.f32 %v692
  %vm699 = vmor %vm697, %vm698
  %v700 = vsel %vm699, %v692, %v696
  %v701 = vand.u32 2147483647, %v691
  %vm702 = vcmp.eq.f32.partialorder %v701, 8.507059e+37
  %v703 = vand.u32 %v691, 2147483648
  %v704 = vor.u32 1.1754944e-38, %v703
  %v705 = vsel %vm702, %v704, %v700
  %v706 = vmul.f32 1.0, %v705
  %v707 = vadd.f32 %v706, %v706
  %v708 = vsub.f32 %v707, 1.0
  %v709 = vsel %vm28, %v708, %v706
  %v710 = vmul.f32 %v709, %v651
  %712 = vrot.lane.b32.xlu0 %v709, 64
  %v713 = vpop.permute.xlu0 %712
  %v715 = vmul.f32 %v709, %v713
  %717 = vrot.lane.b32.xlu0 %v715, 32
  %v718 = vpop.permute.xlu0 %717
  %v720 = vadd.f32 %v710, %v718
  %v721 = vtanh.pop %v720
  %723 = vrot.lane.b32.xlu0 %v721, 64
  %v724 = vpop.permute.xlu0 %723
  %v726 = vmul.f32 %v709, %v724
  %s727 = scalar_lea.vmem %s0, 80
  %v728 = vld [vmem:[%s727] sm:$0xff]
  %730 = vrot.lane.b32.xlu0 %v726, 32
  %v731 = vpop.permute.xlu0 %730
  %v732 = vsel %vm36, %v731, 0
  %734 = vmatpush.msra.mxu0 0.0
  %735 = vmatpush.msra.mxu0 0.0
  %736 = vmatpush.msra.mxu0 0.0
  %737 = vmatpush.msra.mxu0 0.0
  %738 = vmatpush.msra.mxu0 0.0
  %739 = vmatpush.msra.mxu0 0.0
  %740 = vmatpush.msra.mxu0 0.0
  %741 = vmatpush.msra.mxu0 0.0
  %742 = vmatpush.msra.mxu0 0.0
  %743 = vmatpush.msra.mxu0 0.0
  %744 = vmatpush.msra.mxu0 0.0
  %745 = vmatpush.msra.mxu0 0.0
  %746 = vmatpush.msra.mxu0 %v35
  %747 = vmatpush.msra.mxu0 %v34
  %748 = vmatpush.msra.mxu0 %v33
  %749 = vmatpush.msra.mxu0 %v32
  %750 = vmatmul.f32.gmra.mxu0 %v732
  %v751 = vpop.f32.mrf.mxu0
  %v752 = vadd.f32 0.0, %v751
  %753 = vdwg.mxu0
  %v754 = vadd.f32 %v728, %v752
  %v755 = vadd.f32 %v754, %v754
  %v756 = vsel %vm28, %v755, %v754
  %v757 = vxor.u32 %v756, 2147483648
  %v758 = vmul.f32 %v757, 1.442695
  %v759 = vpow.pop %v758
  %v760 = vadd.f32 %v759, 1.0
  %v761 = vrcp.pop %v760
  %v762 = vmul.f32 %v760, %v761
  %v763 = vsub.f32 1.0, %v762
  %v764 = vmul.f32 %v761, %v763
  %v765 = vadd.f32 %v761, %v764
  %vm766 = vweird.f32 %v760
  %vm767 = vweird.f32 %v761
  %vm768 = vmor %vm766, %vm767
  %v769 = vsel %vm768, %v761, %v765
  %v770 = vand.u32 2147483647, %v760
  %vm771 = vcmp.eq.f32.partialorder %v770, 8.507059e+37
  %v772 = vand.u32 %v760, 2147483648
  %v773 = vor.u32 1.1754944e-38, %v772
  %v774 = vsel %vm771, %v773, %v769
  %v775 = vmul.f32 1.0, %v774
  %v776 = vadd.f32 %v775, %v775
  %v777 = vsub.f32 %v776, 1.0
  %v778 = vsel %vm28, %v777, %v775
  %v779 = vmul.f32 %v778, %v720
  %781 = vrot.lane.b32.xlu0 %v778, 64
  %v782 = vpop.permute.xlu0 %781
  %v784 = vmul.f32 %v778, %v782
  %786 = vrot.lane.b32.xlu0 %v784, 32
  %v787 = vpop.permute.xlu0 %786
  %v789 = vadd.f32 %v779, %v787
  %v790 = vtanh.pop %v789
  %792 = vrot.lane.b32.xlu0 %v790, 64
  %v793 = vpop.permute.xlu0 %792
  %v795 = vmul.f32 %v778, %v793
  %s796 = scalar_lea.vmem %s0, 88
  %v797 = vld [vmem:[%s796] sm:$0xff]
  %799 = vrot.lane.b32.xlu0 %v795, 32
  %v800 = vpop.permute.xlu0 %799
  %v801 = vsel %vm36, %v800, 0
  %803 = vmatpush.msra.mxu0 0.0
  %804 = vmatpush.msra.mxu0 0.0
  %805 = vmatpush.msra.mxu0 0.0
  %806 = vmatpush.msra.mxu0 0.0
  %807 = vmatpush.msra.mxu0 0.0
  %808 = vmatpush.msra.mxu0 0.0
  %809 = vmatpush.msra.mxu0 0.0
  %810 = vmatpush.msra.mxu0 0.0
  %811 = vmatpush.msra.mxu0 0.0
  %812 = vmatpush.msra.mxu0 0.0
  %813 = vmatpush.msra.mxu0 0.0
  %814 = vmatpush.msra.mxu0 0.0
  %815 = vmatpush.msra.mxu0 %v35
  %816 = vmatpush.msra.mxu0 %v34
  %817 = vmatpush.msra.mxu0 %v33
  %818 = vmatpush.msra.mxu0 %v32
  %819 = vmatmul.f32.gmra.mxu0 %v801
  %v820 = vpop.f32.mrf.mxu0
  %v821 = vadd.f32 0.0, %v820
  %822 = vdwg.mxu0
  %v823 = vadd.f32 %v797, %v821
  %v824 = vadd.f32 %v823, %v823
  %v825 = vsel %vm28, %v824, %v823
  %v826 = vxor.u32 %v825, 2147483648
  %v827 = vmul.f32 %v826, 1.442695
  %v828 = vpow.pop %v827
  %v829 = vadd.f32 %v828, 1.0
  %v830 = vrcp.pop %v829
  %v831 = vmul.f32 %v829, %v830
  %v832 = vsub.f32 1.0, %v831
  %v833 = vmul.f32 %v830, %v832
  %v834 = vadd.f32 %v830, %v833
  %vm835 = vweird.f32 %v829
  %vm836 = vweird.f32 %v830
  %vm837 = vmor %vm835, %vm836
  %v838 = vsel %vm837, %v830, %v834
  %v839 = vand.u32 2147483647, %v829
  %vm840 = vcmp.eq.f32.partialorder %v839, 8.507059e+37
  %v841 = vand.u32 %v829, 2147483648
  %v842 = vor.u32 1.1754944e-38, %v841
  %v843 = vsel %vm840, %v842, %v838
  %v844 = vmul.f32 1.0, %v843
  %v845 = vadd.f32 %v844, %v844
  %v846 = vsub.f32 %v845, 1.0
  %v847 = vsel %vm28, %v846, %v844
  %v848 = vmul.f32 %v847, %v789
  %850 = vrot.lane.b32.xlu0 %v847, 64
  %v851 = vpop.permute.xlu0 %850
  %v853 = vmul.f32 %v847, %v851
  %855 = vrot.lane.b32.xlu0 %v853, 32
  %v856 = vpop.permute.xlu0 %855
  %v858 = vadd.f32 %v848, %v856
  %v859 = vtanh.pop %v858
  %861 = vrot.lane.b32.xlu0 %v859, 64
  %v862 = vpop.permute.xlu0 %861
  %v864 = vmul.f32 %v847, %v862
  %s865 = scalar_lea.vmem %s0, 96
  %v866 = vld [vmem:[%s865] sm:$0xff]
  %868 = vrot.lane.b32.xlu0 %v864, 32
  %v869 = vpop.permute.xlu0 %868
  %v870 = vsel %vm36, %v869, 0
  %872 = vmatpush.msra.mxu0 0.0
  %873 = vmatpush.msra.mxu0 0.0
  %874 = vmatpush.msra.mxu0 0.0
  %875 = vmatpush.msra.mxu0 0.0
  %876 = vmatpush.msra.mxu0 0.0
  %877 = vmatpush.msra.mxu0 0.0
  %878 = vmatpush.msra.mxu0 0.0
  %879 = vmatpush.msra.mxu0 0.0
  %880 = vmatpush.msra.mxu0 0.0
  %881 = vmatpush.msra.mxu0 0.0
  %882 = vmatpush.msra.mxu0 0.0
  %883 = vmatpush.msra.mxu0 0.0
  %884 = vmatpush.msra.mxu0 %v35
  %885 = vmatpush.msra.mxu0 %v34
  %886 = vmatpush.msra.mxu0 %v33
  %887 = vmatpush.msra.mxu0 %v32
  %888 = vmatmul.f32.gmra.mxu0 %v870
  %v889 = vpop.f32.mrf.mxu0
  %v890 = vadd.f32 0.0, %v889
  %891 = vdwg.mxu0
  %v892 = vadd.f32 %v866, %v890
  %v893 = vadd.f32 %v892, %v892
  %v894 = vsel %vm28, %v893, %v892
  %v895 = vxor.u32 %v894, 2147483648
  %v896 = vmul.f32 %v895, 1.442695
  %v897 = vpow.pop %v896
  %v898 = vadd.f32 %v897, 1.0
  %v899 = vrcp.pop %v898
  %v900 = vmul.f32 %v898, %v899
  %v901 = vsub.f32 1.0, %v900
  %v902 = vmul.f32 %v899, %v901
  %v903 = vadd.f32 %v899, %v902
  %vm904 = vweird.f32 %v898
  %vm905 = vweird.f32 %v899
  %vm906 = vmor %vm904, %vm905
  %v907 = vsel %vm906, %v899, %v903
  %v908 = vand.u32 2147483647, %v898
  %vm909 = vcmp.eq.f32.partialorder %v908, 8.507059e+37
  %v910 = vand.u32 %v898, 2147483648
  %v911 = vor.u32 1.1754944e-38, %v910
  %v912 = vsel %vm909, %v911, %v907
  %v913 = vmul.f32 1.0, %v912
  %v914 = vadd.f32 %v913, %v913
  %v915 = vsub.f32 %v914, 1.0
  %v916 = vsel %vm28, %v915, %v913
  %v917 = vmul.f32 %v916, %v858
  %919 = vrot.lane.b32.xlu0 %v916, 64
  %v920 = vpop.permute.xlu0 %919
  %v922 = vmul.f32 %v916, %v920
  %924 = vrot.lane.b32.xlu0 %v922, 32
  %v925 = vpop.permute.xlu0 %924
  %v927 = vadd.f32 %v917, %v925
  %v928 = vtanh.pop %v927
  %930 = vrot.lane.b32.xlu0 %v928, 64
  %v931 = vpop.permute.xlu0 %930
  %v933 = vmul.f32 %v916, %v931
  %s934 = scalar_lea.vmem %s0, 104
  %v935 = vld [vmem:[%s934] sm:$0xff]
  %937 = vrot.lane.b32.xlu0 %v933, 32
  %v938 = vpop.permute.xlu0 %937
  %v939 = vsel %vm36, %v938, 0
  %941 = vmatpush.msra.mxu0 0.0
  %942 = vmatpush.msra.mxu0 0.0
  %943 = vmatpush.msra.mxu0 0.0
  %944 = vmatpush.msra.mxu0 0.0
  %945 = vmatpush.msra.mxu0 0.0
  %946 = vmatpush.msra.mxu0 0.0
  %947 = vmatpush.msra.mxu0 0.0
  %948 = vmatpush.msra.mxu0 0.0
  %949 = vmatpush.msra.mxu0 0.0
  %950 = vmatpush.msra.mxu0 0.0
  %951 = vmatpush.msra.mxu0 0.0
  %952 = vmatpush.msra.mxu0 0.0
  %953 = vmatpush.msra.mxu0 %v35
  %954 = vmatpush.msra.mxu0 %v34
  %955 = vmatpush.msra.mxu0 %v33
  %956 = vmatpush.msra.mxu0 %v32
  %957 = vmatmul.f32.gmra.mxu0 %v939
  %v958 = vpop.f32.mrf.mxu0
  %v959 = vadd.f32 0.0, %v958
  %960 = vdwg.mxu0
  %v961 = vadd.f32 %v935, %v959
  %v962 = vadd.f32 %v961, %v961
  %v963 = vsel %vm28, %v962, %v961
  %v964 = vxor.u32 %v963, 2147483648
  %v965 = vmul.f32 %v964, 1.442695
  %v966 = vpow.pop %v965
  %v967 = vadd.f32 %v966, 1.0
  %v968 = vrcp.pop %v967
  %v969 = vmul.f32 %v967, %v968
  %v970 = vsub.f32 1.0, %v969
  %v971 = vmul.f32 %v968, %v970
  %v972 = vadd.f32 %v968, %v971
  %vm973 = vweird.f32 %v967
  %vm974 = vweird.f32 %v968
  %vm975 = vmor %vm973, %vm974
  %v976 = vsel %vm975, %v968, %v972
  %v977 = vand.u32 2147483647, %v967
  %vm978 = vcmp.eq.f32.partialorder %v977, 8.507059e+37
  %v979 = vand.u32 %v967, 2147483648
  %v980 = vor.u32 1.1754944e-38, %v979
  %v981 = vsel %vm978, %v980, %v976
  %v982 = vmul.f32 1.0, %v981
  %v983 = vadd.f32 %v982, %v982
  %v984 = vsub.f32 %v983, 1.0
  %v985 = vsel %vm28, %v984, %v982
  %v986 = vmul.f32 %v985, %v927
  %988 = vrot.lane.b32.xlu0 %v985, 64
  %v989 = vpop.permute.xlu0 %988
  %v991 = vmul.f32 %v985, %v989
  %993 = vrot.lane.b32.xlu0 %v991, 32
  %v994 = vpop.permute.xlu0 %993
  %v996 = vadd.f32 %v986, %v994
  %v997 = vtanh.pop %v996
  %999 = vrot.lane.b32.xlu0 %v997, 64
  %v1000 = vpop.permute.xlu0 %999
  %v1002 = vmul.f32 %v985, %v1000
  %s1003 = scalar_lea.vmem %s0, 112
  %v1004 = vld [vmem:[%s1003] sm:$0xff]
  %1006 = vrot.lane.b32.xlu0 %v1002, 32
  %v1007 = vpop.permute.xlu0 %1006
  %v1008 = vsel %vm36, %v1007, 0
  %1010 = vmatpush.msra.mxu0 0.0
  %1011 = vmatpush.msra.mxu0 0.0
  %1012 = vmatpush.msra.mxu0 0.0
  %1013 = vmatpush.msra.mxu0 0.0
  %1014 = vmatpush.msra.mxu0 0.0
  %1015 = vmatpush.msra.mxu0 0.0
  %1016 = vmatpush.msra.mxu0 0.0
  %1017 = vmatpush.msra.mxu0 0.0
  %1018 = vmatpush.msra.mxu0 0.0
  %1019 = vmatpush.msra.mxu0 0.0
  %1020 = vmatpush.msra.mxu0 0.0
  %1021 = vmatpush.msra.mxu0 0.0
  %1022 = vmatpush.msra.mxu0 %v35
  %1023 = vmatpush.msra.mxu0 %v34
  %1024 = vmatpush.msra.mxu0 %v33
  %1025 = vmatpush.msra.mxu0 %v32
  %1026 = vmatmul.f32.gmra.mxu0 %v1008
  %v1027 = vpop.f32.mrf.mxu0
  %v1028 = vadd.f32 0.0, %v1027
  %1029 = vdwg.mxu0
  %v1030 = vadd.f32 %v1004, %v1028
  %v1031 = vadd.f32 %v1030, %v1030
  %v1032 = vsel %vm28, %v1031, %v1030
  %v1033 = vxor.u32 %v1032, 2147483648
  %v1034 = vmul.f32 %v1033, 1.442695
  %v1035 = vpow.pop %v1034
  %v1036 = vadd.f32 %v1035, 1.0
  %v1037 = vrcp.pop %v1036
  %v1038 = vmul.f32 %v1036, %v1037
  %v1039 = vsub.f32 1.0, %v1038
  %v1040 = vmul.f32 %v1037, %v1039
  %v1041 = vadd.f32 %v1037, %v1040
  %vm1042 = vweird.f32 %v1036
  %vm1043 = vweird.f32 %v1037
  %vm1044 = vmor %vm1042, %vm1043
  %v1045 = vsel %vm1044, %v1037, %v1041
  %v1046 = vand.u32 2147483647, %v1036
  %vm1047 = vcmp.eq.f32.partialorder %v1046, 8.507059e+37
  %v1048 = vand.u32 %v1036, 2147483648
  %v1049 = vor.u32 1.1754944e-38, %v1048
  %v1050 = vsel %vm1047, %v1049, %v1045
  %v1051 = vmul.f32 1.0, %v1050
  %v1052 = vadd.f32 %v1051, %v1051
  %v1053 = vsub.f32 %v1052, 1.0
  %v1054 = vsel %vm28, %v1053, %v1051
  %v1055 = vmul.f32 %v1054, %v996
  %1057 = vrot.lane.b32.xlu0 %v1054, 64
  %v1058 = vpop.permute.xlu0 %1057
  %v1060 = vmul.f32 %v1054, %v1058
  %1062 = vrot.lane.b32.xlu0 %v1060, 32
  %v1063 = vpop.permute.xlu0 %1062
  %v1065 = vadd.f32 %v1055, %v1063
  %v1066 = vtanh.pop %v1065
  %1068 = vrot.lane.b32.xlu0 %v1066, 64
  %v1069 = vpop.permute.xlu0 %1068
  %v1071 = vmul.f32 %v1054, %v1069
  %s1072 = scalar_lea.vmem %s0, 120
  %v1073 = vld [vmem:[%s1072] sm:$0xff]
  %1075 = vrot.lane.b32.xlu0 %v1071, 32
  %v1076 = vpop.permute.xlu0 %1075
  %v1077 = vsel %vm36, %v1076, 0
  %1079 = vmatpush.msra.mxu0 0.0
  %1080 = vmatpush.msra.mxu0 0.0
  %1081 = vmatpush.msra.mxu0 0.0
  %1082 = vmatpush.msra.mxu0 0.0
  %1083 = vmatpush.msra.mxu0 0.0
  %1084 = vmatpush.msra.mxu0 0.0
  %1085 = vmatpush.msra.mxu0 0.0
  %1086 = vmatpush.msra.mxu0 0.0
  %1087 = vmatpush.msra.mxu0 0.0
  %1088 = vmatpush.msra.mxu0 0.0
  %1089 = vmatpush.msra.mxu0 0.0
  %1090 = vmatpush.msra.mxu0 0.0
  %1091 = vmatpush.msra.mxu0 %v35
  %1092 = vmatpush.msra.mxu0 %v34
  %1093 = vmatpush.msra.mxu0 %v33
  %1094 = vmatpush.msra.mxu0 %v32
  %1095 = vmatmul.f32.gmra.mxu0 %v1077
  %v1096 = vpop.f32.mrf.mxu0
  %v1097 = vadd.f32 0.0, %v1096
  %1098 = vdwg.mxu0
  %v1099 = vadd.f32 %v1073, %v1097
  %v1100 = vadd.f32 %v1099, %v1099
  %v1101 = vsel %vm28, %v1100, %v1099
  %v1102 = vxor.u32 %v1101, 2147483648
  %v1103 = vmul.f32 %v1102, 1.442695
  %v1104 = vpow.pop %v1103
  %v1105 = vadd.f32 %v1104, 1.0
  %v1106 = vrcp.pop %v1105
  %v1107 = vmul.f32 %v1105, %v1106
  %v1108 = vsub.f32 1.0, %v1107
  %v1109 = vmul.f32 %v1106, %v1108
  %v1110 = vadd.f32 %v1106, %v1109
  %vm1111 = vweird.f32 %v1105
  %vm1112 = vweird.f32 %v1106
  %vm1113 = vmor %vm1111, %vm1112
  %v1114 = vsel %vm1113, %v1106, %v1110
  %v1115 = vand.u32 2147483647, %v1105
  %vm1116 = vcmp.eq.f32.partialorder %v1115, 8.507059e+37
  %v1117 = vand.u32 %v1105, 2147483648
  %v1118 = vor.u32 1.1754944e-38, %v1117
  %v1119 = vsel %vm1116, %v1118, %v1114
  %v1120 = vmul.f32 1.0, %v1119
  %v1121 = vadd.f32 %v1120, %v1120
  %v1122 = vsub.f32 %v1121, 1.0
  %v1123 = vsel %vm28, %v1122, %v1120
  %v1124 = vmul.f32 %v1123, %v1065
  %1126 = vrot.lane.b32.xlu0 %v1123, 64
  %v1127 = vpop.permute.xlu0 %1126
  %v1129 = vmul.f32 %v1123, %v1127
  %1131 = vrot.lane.b32.xlu0 %v1129, 32
  %v1132 = vpop.permute.xlu0 %1131
  %v1134 = vadd.f32 %v1124, %v1132
  %v1135 = vtanh.pop %v1134
  %1137 = vrot.lane.b32.xlu0 %v1135, 64
  %v1138 = vpop.permute.xlu0 %1137
  %v1140 = vmul.f32 %v1123, %v1138
  %s1141 = scalar_lea.vmem %s0, 128
  %v1142 = vld [vmem:[%s1141] sm:$0xff]
  %1144 = vrot.lane.b32.xlu0 %v1140, 32
  %v1145 = vpop.permute.xlu0 %1144
  %v1146 = vsel %vm36, %v1145, 0
  %1148 = vmatpush.msra.mxu0 0.0
  %1149 = vmatpush.msra.mxu0 0.0
  %1150 = vmatpush.msra.mxu0 0.0
  %1151 = vmatpush.msra.mxu0 0.0
  %1152 = vmatpush.msra.mxu0 0.0
  %1153 = vmatpush.msra.mxu0 0.0
  %1154 = vmatpush.msra.mxu0 0.0
  %1155 = vmatpush.msra.mxu0 0.0
  %1156 = vmatpush.msra.mxu0 0.0
  %1157 = vmatpush.msra.mxu0 0.0
  %1158 = vmatpush.msra.mxu0 0.0
  %1159 = vmatpush.msra.mxu0 0.0
  %1160 = vmatpush.msra.mxu0 %v35
  %1161 = vmatpush.msra.mxu0 %v34
  %1162 = vmatpush.msra.mxu0 %v33
  %1163 = vmatpush.msra.mxu0 %v32
  %1164 = vmatmul.f32.gmra.mxu0 %v1146
  %v1165 = vpop.f32.mrf.mxu0
  %v1166 = vadd.f32 0.0, %v1165
  %1167 = vdwg.mxu0
  %v1168 = vadd.f32 %v1142, %v1166
  %v1169 = vadd.f32 %v1168, %v1168
  %v1170 = vsel %vm28, %v1169, %v1168
  %v1171 = vxor.u32 %v1170, 2147483648
  %v1172 = vmul.f32 %v1171, 1.442695
  %v1173 = vpow.pop %v1172
  %v1174 = vadd.f32 %v1173, 1.0
  %v1175 = vrcp.pop %v1174
  %v1176 = vmul.f32 %v1174, %v1175
  %v1177 = vsub.f32 1.0, %v1176
  %v1178 = vmul.f32 %v1175, %v1177
  %v1179 = vadd.f32 %v1175, %v1178
  %vm1180 = vweird.f32 %v1174
  %vm1181 = vweird.f32 %v1175
  %vm1182 = vmor %vm1180, %vm1181
  %v1183 = vsel %vm1182, %v1175, %v1179
  %v1184 = vand.u32 2147483647, %v1174
  %vm1185 = vcmp.eq.f32.partialorder %v1184, 8.507059e+37
  %v1186 = vand.u32 %v1174, 2147483648
  %v1187 = vor.u32 1.1754944e-38, %v1186
  %v1188 = vsel %vm1185, %v1187, %v1183
  %v1189 = vmul.f32 1.0, %v1188
  %v1190 = vadd.f32 %v1189, %v1189
  %v1191 = vsub.f32 %v1190, 1.0
  %v1192 = vsel %vm28, %v1191, %v1189
  %v1193 = vmul.f32 %v1192, %v1134
  %1195 = vrot.lane.b32.xlu0 %v1192, 64
  %v1196 = vpop.permute.xlu0 %1195
  %v1198 = vmul.f32 %v1192, %v1196
  %1200 = vrot.lane.b32.xlu0 %v1198, 32
  %v1201 = vpop.permute.xlu0 %1200
  %v1203 = vadd.f32 %v1193, %v1201
  %v1204 = vtanh.pop %v1203
  %1206 = vrot.lane.b32.xlu0 %v1204, 64
  %v1207 = vpop.permute.xlu0 %1206
  %v1209 = vmul.f32 %v1192, %v1207
  %s1210 = scalar_lea.vmem %s0, 136
  %v1211 = vld [vmem:[%s1210] sm:$0xff]
  %1213 = vrot.lane.b32.xlu0 %v1209, 32
  %v1214 = vpop.permute.xlu0 %1213
  %v1215 = vsel %vm36, %v1214, 0
  %1217 = vmatpush.msra.mxu0 0.0
  %1218 = vmatpush.msra.mxu0 0.0
  %1219 = vmatpush.msra.mxu0 0.0
  %1220 = vmatpush.msra.mxu0 0.0
  %1221 = vmatpush.msra.mxu0 0.0
  %1222 = vmatpush.msra.mxu0 0.0
  %1223 = vmatpush.msra.mxu0 0.0
  %1224 = vmatpush.msra.mxu0 0.0
  %1225 = vmatpush.msra.mxu0 0.0
  %1226 = vmatpush.msra.mxu0 0.0
  %1227 = vmatpush.msra.mxu0 0.0
  %1228 = vmatpush.msra.mxu0 0.0
  %1229 = vmatpush.msra.mxu0 %v35
  %1230 = vmatpush.msra.mxu0 %v34
  %1231 = vmatpush.msra.mxu0 %v33
  %1232 = vmatpush.msra.mxu0 %v32
  %1233 = vmatmul.f32.gmra.mxu0 %v1215
  %v1234 = vpop.f32.mrf.mxu0
  %v1235 = vadd.f32 0.0, %v1234
  %1236 = vdwg.mxu0
  %v1237 = vadd.f32 %v1211, %v1235
  %v1238 = vadd.f32 %v1237, %v1237
  %v1239 = vsel %vm28, %v1238, %v1237
  %v1240 = vxor.u32 %v1239, 2147483648
  %v1241 = vmul.f32 %v1240, 1.442695
  %v1242 = vpow.pop %v1241
  %v1243 = vadd.f32 %v1242, 1.0
  %v1244 = vrcp.pop %v1243
  %v1245 = vmul.f32 %v1243, %v1244
  %v1246 = vsub.f32 1.0, %v1245
  %v1247 = vmul.f32 %v1244, %v1246
  %v1248 = vadd.f32 %v1244, %v1247
  %vm1249 = vweird.f32 %v1243
  %vm1250 = vweird.f32 %v1244
  %vm1251 = vmor %vm1249, %vm1250
  %v1252 = vsel %vm1251, %v1244, %v1248
  %v1253 = vand.u32 2147483647, %v1243
  %vm1254 = vcmp.eq.f32.partialorder %v1253, 8.507059e+37
  %v1255 = vand.u32 %v1243, 2147483648
  %v1256 = vor.u32 1.1754944e-38, %v1255
  %v1257 = vsel %vm1254, %v1256, %v1252
  %v1258 = vmul.f32 1.0, %v1257
  %v1259 = vadd.f32 %v1258, %v1258
  %v1260 = vsub.f32 %v1259, 1.0
  %v1261 = vsel %vm28, %v1260, %v1258
  %v1262 = vmul.f32 %v1261, %v1203
  %1264 = vrot.lane.b32.xlu0 %v1261, 64
  %v1265 = vpop.permute.xlu0 %1264
  %v1267 = vmul.f32 %v1261, %v1265
  %1269 = vrot.lane.b32.xlu0 %v1267, 32
  %v1270 = vpop.permute.xlu0 %1269
  %v1272 = vadd.f32 %v1262, %v1270
  %v1273 = vtanh.pop %v1272
  %1275 = vrot.lane.b32.xlu0 %v1273, 64
  %v1276 = vpop.permute.xlu0 %1275
  %v1278 = vmul.f32 %v1261, %v1276
  %s1279 = scalar_lea.vmem %s0, 144
  %v1280 = vld [vmem:[%s1279] sm:$0xff]
  %1282 = vrot.lane.b32.xlu0 %v1278, 32
  %v1283 = vpop.permute.xlu0 %1282
  %v1284 = vsel %vm36, %v1283, 0
  %1286 = vmatpush.msra.mxu0 0.0
  %1287 = vmatpush.msra.mxu0 0.0
  %1288 = vmatpush.msra.mxu0 0.0
  %1289 = vmatpush.msra.mxu0 0.0
  %1290 = vmatpush.msra.mxu0 0.0
  %1291 = vmatpush.msra.mxu0 0.0
  %1292 = vmatpush.msra.mxu0 0.0
  %1293 = vmatpush.msra.mxu0 0.0
  %1294 = vmatpush.msra.mxu0 0.0
  %1295 = vmatpush.msra.mxu0 0.0
  %1296 = vmatpush.msra.mxu0 0.0
  %1297 = vmatpush.msra.mxu0 0.0
  %1298 = vmatpush.msra.mxu0 %v35
  %1299 = vmatpush.msra.mxu0 %v34
  %1300 = vmatpush.msra.mxu0 %v33
  %1301 = vmatpush.msra.mxu0 %v32
  %1302 = vmatmul.f32.gmra.mxu0 %v1284
  %v1303 = vpop.f32.mrf.mxu0
  %v1304 = vadd.f32 0.0, %v1303
  %1305 = vdwg.mxu0
  %v1306 = vadd.f32 %v1280, %v1304
  %v1307 = vadd.f32 %v1306, %v1306
  %v1308 = vsel %vm28, %v1307, %v1306
  %v1309 = vxor.u32 %v1308, 2147483648
  %v1310 = vmul.f32 %v1309, 1.442695
  %v1311 = vpow.pop %v1310
  %v1312 = vadd.f32 %v1311, 1.0
  %v1313 = vrcp.pop %v1312
  %v1314 = vmul.f32 %v1312, %v1313
  %v1315 = vsub.f32 1.0, %v1314
  %v1316 = vmul.f32 %v1313, %v1315
  %v1317 = vadd.f32 %v1313, %v1316
  %vm1318 = vweird.f32 %v1312
  %vm1319 = vweird.f32 %v1313
  %vm1320 = vmor %vm1318, %vm1319
  %v1321 = vsel %vm1320, %v1313, %v1317
  %v1322 = vand.u32 2147483647, %v1312
  %vm1323 = vcmp.eq.f32.partialorder %v1322, 8.507059e+37
  %v1324 = vand.u32 %v1312, 2147483648
  %v1325 = vor.u32 1.1754944e-38, %v1324
  %v1326 = vsel %vm1323, %v1325, %v1321
  %v1327 = vmul.f32 1.0, %v1326
  %v1328 = vadd.f32 %v1327, %v1327
  %v1329 = vsub.f32 %v1328, 1.0
  %v1330 = vsel %vm28, %v1329, %v1327
  %v1331 = vmul.f32 %v1330, %v1272
  %1333 = vrot.lane.b32.xlu0 %v1330, 64
  %v1334 = vpop.permute.xlu0 %1333
  %v1336 = vmul.f32 %v1330, %v1334
  %1338 = vrot.lane.b32.xlu0 %v1336, 32
  %v1339 = vpop.permute.xlu0 %1338
  %v1341 = vadd.f32 %v1331, %v1339
  %v1342 = vtanh.pop %v1341
  %1344 = vrot.lane.b32.xlu0 %v1342, 64
  %v1345 = vpop.permute.xlu0 %1344
  %v1347 = vmul.f32 %v1330, %v1345
  %s1348 = scalar_lea.vmem %s0, 152
  %v1349 = vld [vmem:[%s1348] sm:$0xff]
  %1351 = vrot.lane.b32.xlu0 %v1347, 32
  %v1352 = vpop.permute.xlu0 %1351
  %v1353 = vsel %vm36, %v1352, 0
  %1355 = vmatpush.msra.mxu0 0.0
  %1356 = vmatpush.msra.mxu0 0.0
  %1357 = vmatpush.msra.mxu0 0.0
  %1358 = vmatpush.msra.mxu0 0.0
  %1359 = vmatpush.msra.mxu0 0.0
  %1360 = vmatpush.msra.mxu0 0.0
  %1361 = vmatpush.msra.mxu0 0.0
  %1362 = vmatpush.msra.mxu0 0.0
  %1363 = vmatpush.msra.mxu0 0.0
  %1364 = vmatpush.msra.mxu0 0.0
  %1365 = vmatpush.msra.mxu0 0.0
  %1366 = vmatpush.msra.mxu0 0.0
  %1367 = vmatpush.msra.mxu0 %v35
  %1368 = vmatpush.msra.mxu0 %v34
  %1369 = vmatpush.msra.mxu0 %v33
  %1370 = vmatpush.msra.mxu0 %v32
  %1371 = vmatmul.f32.gmra.mxu0 %v1353
  %v1372 = vpop.f32.mrf.mxu0
  %v1373 = vadd.f32 0.0, %v1372
  %1374 = vdwg.mxu0
  %v1375 = vadd.f32 %v1349, %v1373
  %v1376 = vadd.f32 %v1375, %v1375
  %v1377 = vsel %vm28, %v1376, %v1375
  %v1378 = vxor.u32 %v1377, 2147483648
  %v1379 = vmul.f32 %v1378, 1.442695
  %v1380 = vpow.pop %v1379
  %v1381 = vadd.f32 %v1380, 1.0
  %v1382 = vrcp.pop %v1381
  %v1383 = vmul.f32 %v1381, %v1382
  %v1384 = vsub.f32 1.0, %v1383
  %v1385 = vmul.f32 %v1382, %v1384
  %v1386 = vadd.f32 %v1382, %v1385
  %vm1387 = vweird.f32 %v1381
  %vm1388 = vweird.f32 %v1382
  %vm1389 = vmor %vm1387, %vm1388
  %v1390 = vsel %vm1389, %v1382, %v1386
  %v1391 = vand.u32 2147483647, %v1381
  %vm1392 = vcmp.eq.f32.partialorder %v1391, 8.507059e+37
  %v1393 = vand.u32 %v1381, 2147483648
  %v1394 = vor.u32 1.1754944e-38, %v1393
  %v1395 = vsel %vm1392, %v1394, %v1390
  %v1396 = vmul.f32 1.0, %v1395
  %v1397 = vadd.f32 %v1396, %v1396
  %v1398 = vsub.f32 %v1397, 1.0
  %v1399 = vsel %vm28, %v1398, %v1396
  %v1400 = vmul.f32 %v1399, %v1341
  %1402 = vrot.lane.b32.xlu0 %v1399, 64
  %v1403 = vpop.permute.xlu0 %1402
  %v1405 = vmul.f32 %v1399, %v1403
  %1407 = vrot.lane.b32.xlu0 %v1405, 32
  %v1408 = vpop.permute.xlu0 %1407
  %v1410 = vadd.f32 %v1400, %v1408
  %v1411 = vtanh.pop %v1410
  %1413 = vrot.lane.b32.xlu0 %v1411, 64
  %v1414 = vpop.permute.xlu0 %1413
  %v1416 = vmul.f32 %v1399, %v1414
  %1418 = vrot.lane.b32.xlu0 %v1416, 32
  %v1419 = vpop.permute.xlu0 %1418
  %1421 = vst.msk [vmem:[#allocation2] sm:$0xff] %vm36, %v1419
  %1423 = vrot.lane.b32.xlu0 %v1410, 96
  %v1424 = vpop.permute.xlu0 %1423
  %1426 = vst.msk [vmem:[#allocation3] sm:$0xff] %vm36, %v1424
  // Predicated region
  $region22: #{rnn_classifier_forward.1} parent=0 // pred_check
    %p1427 = pneg %p17
  $region23: #{rnn_classifier_forward.1} parent=0 // pred_check_branch
    %1429 = sbr.rel (%p1427) target = $region25
  $region24: #{rnn_classifier_forward.1} parent=0 // pred_region
    %v1430 = vld [vmem:[%s2] sm:$0xff]
    %v1431 = vld [vmem:[%s2 + $0x8] sm:$0xff]
    %v1432 = vld [vmem:[%s2 + $0x10] sm:$0xff]
    %v1433 = vld [vmem:[%s2 + $0x18] sm:$0xff]
    %v1434 = vld [vmem:[%s3] sm:$0x1]
    %v1436 = vperm.slane %v1434, 0
    %v1438 = vsel %vm36, %v1419, 0
    %1440 = vmatpush.msra.mxu0 0.0
    %1441 = vmatpush.msra.mxu0 0.0
    %1442 = vmatpush.msra.mxu0 0.0
    %1443 = vmatpush.msra.mxu0 0.0
    %1444 = vmatpush.msra.mxu0 0.0
    %1445 = vmatpush.msra.mxu0 0.0
    %1446 = vmatpush.msra.mxu0 0.0
    %1447 = vmatpush.msra.mxu0 0.0
    %1448 = vmatpush.msra.mxu0 0.0
    %1449 = vmatpush.msra.mxu0 0.0
    %1450 = vmatpush.msra.mxu0 0.0
    %1451 = vmatpush.msra.mxu0 0.0
    %1452 = vmatpush.msra.mxu0 %v1433
    %1453 = vmatpush.msra.mxu0 %v1432
    %1454 = vmatpush.msra.mxu0 %v1431
    %1455 = vmatpush.msra.mxu0 %v1430
    %1456 = vmatmul.f32.gmra.mxu0 %v1438
    %v1457 = vpop.f32.mrf.mxu0
    %v1458 = vadd.f32 %v1436, %v1457
    %1459 = vdwg.mxu0
    %1460 = vst [vmem:[%s4] sm:$0xff] %v1458
  $region25: #{rnn_classifier_forward.1} parent=0 // pred_fallthru
    _
  // Predicated region
  $region26: #{rnn_classifier_forward.1} parent=0 // pred_check
    _
  $region27: #{rnn_classifier_forward.1} parent=0 // pred_check_branch
    %1462 = sbr.rel (0) target = $region29
  $region28: #{rnn_classifier_forward.1} parent=0 // pred_region
    _
  $region29: #{rnn_classifier_forward.1} parent=0 // pred_fallthru
    _
  // Predicated region
  $region30: #{rnn_classifier_forward.1} parent=0 // pred_check
    _
  $region31: #{rnn_classifier_forward.1} parent=0 // pred_check_branch
    %1464 = sbr.rel (0) target = $region33
  $region32: #{rnn_classifier_forward.1} parent=0 // pred_region
    _
  $region33: #{rnn_classifier_forward.1} parent=0 // pred_fallthru
    _

</llo_original>
